<compile_context>
chip_gen: v5e
topology: v5e:2x2
jax: 0.10.0
libtpu: 0.0.40
codegen_flags: <defaults>
</compile_context>

<pallas_src>
import jax
import jax.numpy as jnp
import numpy as np
from jax.experimental import pallas as pl
from jax.experimental.pallas import tpu as pltpu

FEAT_LEN = 32
EPS = 1e-5
NEG_INF = float("-inf")


def _make_kernel(eff_tile, tiles_per_split, n_actual, n_padded):
    need_mask = (n_actual != n_padded)

    def kernel(x_ref,
               w1, b1, w2, b2, w3, b3, w4, b4, w5,
               o_ref):
        s = pl.program_id(1)          # split index (partial max)
        t = pl.program_id(2)          # point-tile index within the split

        @pl.when(t == 0)
        def _():
            # Running max over *pre-bias / pre-ReLU* layer-5 activations can be
            # negative, so the identity element is -inf (not 0).
            o_ref[...] = jnp.full(o_ref.shape, NEG_INF, o_ref.dtype)

        pts = x_ref[0]                # (eff_tile, 8) f32, channels zero-padded 3->8

        # ---- Layer 1 on the MXU (f32, K padded to 8). MXU has slack everywhere in
        # this channel-thin net; this frees the binding VPU slot.
        h = jnp.dot(pts, w1[...], preferred_element_type=jnp.float32) + b1[...]
        h = jnp.maximum(h, 0.0).astype(jnp.bfloat16)           # (eff_tile, 64)

        def mm_relu(h_in, w_r, b_r):
            # bf16 operands on the MXU, f32 accumulation (BN already folded);
            # emit bf16 so the next layer does not re-cast its input.
            y = jnp.dot(h_in, w_r[...], preferred_element_type=jnp.float32) + b_r[...]
            return jnp.maximum(y, 0.0).astype(jnp.bfloat16)

        h = mm_relu(h, w2, b2)                                 # (eff_tile, 64)
        h = mm_relu(h, w3, b3)                                 # (eff_tile, 64)
        h = mm_relu(h, w4, b4)                                 # (eff_tile, 128)

        # ---- Layer 5: matmul ONLY. Bias + ReLU commute with the row-max and are
        # deferred to the XLA epilogue (saves two VPU passes over this slab/tile).
        y5 = jnp.dot(h, w5[...], preferred_element_type=jnp.float32)  # (eff_tile, 1024) f32

        def fold_in(y):
            o_ref[0, 0] = jnp.maximum(o_ref[0, 0],
                                      jnp.max(y, axis=0, keepdims=True))

        if need_mask:
            gidx = s * tiles_per_split + t
            # Only tiles that actually contain padded rows pay for the select.
            has_pad = (gidx + 1) * eff_tile > n_actual

            @pl.when(jnp.logical_not(has_pad))
            def _():
                fold_in(y5)

            @pl.when(has_pad)
            def _():
                row = gidx * eff_tile + jax.lax.broadcasted_iota(
                    jnp.int32, (eff_tile, 1), 0)
                fold_in(jnp.where(row < n_actual, y5, NEG_INF))
        else:
            fold_in(y5)

    return kernel


def part_pointnet_forward(x, folded_params, *, tile_n=1024):
    """x: (B, N, 3) float32.  folded_params: list of (W_t (Cin,Cout) f32, b (1,Cout) f32)
    with eval-mode BatchNorm folded in."""
    B, N, C = x.shape
    assert C == 3
    (w1, b1), (w2, b2), (w3, b3), (w4, b4), (w5, b5), (w6, b6) = folded_params

    # Points tiling: multiple of 8 sublanes, capped at tile_n.
    eff_tile = min(tile_n, ((N + 7) // 8) * 8)
    eff_tile = ((eff_tile + 7) // 8) * 8
    n_tiles = -(-N // eff_tile)

    # Split the point-tile axis into independent partial maxes so both v7x
    # TensorCores get work even for B == 1; partials are combined in XLA.
    n_splits = 2 if n_tiles >= 2 else 1
    tiles_per_split = -(-n_tiles // n_splits)
    n_padded = n_splits * tiles_per_split * eff_tile

    # Pad the points axis (masked to -inf in-kernel) and pad channels 3 -> 8 so
    # layer 1 is a well-shaped MXU matmul.
    x_p = jnp.zeros((B, n_padded, 8), jnp.float32).at[:, :N, :3].set(x)
    w1_p = jnp.zeros((8, w1.shape[1]), jnp.float32).at[:3, :].set(w1)

    # bf16 weights for the MXU layers 2..5 (f32 accumulation in-kernel).
    w2b, w3b, w4b, w5b = (w.astype(jnp.bfloat16) for w in (w2, w3, w4, w5))

    params_flat = [w1_p, b1, w2b, b2, w3b, b3, w4b, b4, w5b]

    T = tiles_per_split
    in_specs = [pl.BlockSpec((1, eff_tile, 8), lambda b, s, t: (b, s * T + t, 0))]
    for p in params_flat:
        # Full-array blocks with a constant index map: fetched once, reused.
        in_specs.append(pl.BlockSpec(p.shape, lambda b, s, t: (0, 0)))

    partial = pl.pallas_call(
        _make_kernel(eff_tile, T, N, n_padded),
        out_shape=jax.ShapeDtypeStruct((B, n_splits, 1, 1024), jnp.float32),
        grid_spec=pltpu.PrefetchScalarGridSpec(
            num_scalar_prefetch=0,
            grid=(B, n_splits, T),
            in_specs=in_specs,
            # Lane-dense (1024-wide) output block doubles as the running-max
            # accumulator across the "arbitrary" t axis.
            out_specs=pl.BlockSpec((1, 1, 1, 1024), lambda b, s, t: (b, s, 0, 0)),
        ),
        compiler_params=pltpu.CompilerParams(
            dimension_semantics=("parallel", "parallel", "arbitrary"),
            vmem_limit_bytes=32 * 1024 * 1024,
        ),
    )(x_p, *params_flat)

    # XLA epilogue: combine split partials, apply the deferred layer-5 bias + ReLU,
    # then run the 1024 -> F head as one batched matmul (better MXU shape than an
    # M=1 in-kernel pass, and no output-column padding needed).
    pooled = jnp.max(partial, axis=(1, 2))                         # (B, 1024)
    g = jnp.maximum(pooled + b5, 0.0)
    out = jnp.dot(g.astype(jnp.bfloat16), w6.astype(jnp.bfloat16),
                  preferred_element_type=jnp.float32) + b6
    return jnp.maximum(out, 0.0)                                   # (B, F)


def _init_params(key, feat_len):
    """Deterministic synthetic parameters matching the PyTorch module's shapes."""
    dims = [(3, 64), (64, 64), (64, 64), (64, 128), (128, 1024), (1024, feat_len)]
    params = []
    for (cin, cout) in dims:
        key, k_w, k_b, k_g, k_be, k_m, k_v = jax.random.split(key, 7)
        w = jax.random.normal(k_w, (cout, cin), jnp.float32) * 0.1   # conv/linear weight (out, in)
        b = jax.random.normal(k_b, (cout,), jnp.float32) * 0.05      # bias
        gamma = 1.0 + 0.1 * jax.random.normal(k_g, (cout,), jnp.float32)
        beta = 0.05 * jax.random.normal(k_be, (cout,), jnp.float32)
        mean = 0.05 * jax.random.normal(k_m, (cout,), jnp.float32)
        var = jnp.abs(jax.random.normal(k_v, (cout,), jnp.float32)) + 0.5
        params.append((w, b, gamma, beta, mean, var))
    return params


def _fold_bn(params):
    """Fold eval-mode BatchNorm into each (matmul weight, bias), in f32."""
    # TODO(synk): training-mode BatchNorm (batch statistics) is not implemented;
    # eval-mode running-stat folding is used, matching module.eval() semantics.
    folded = []
    for (w, b, gamma, beta, mean, var) in params:
        scale = gamma / jnp.sqrt(var + EPS)                       # (C_out,)
        w_t = w.T * scale[None, :]                                # (C_in, C_out)
        b_f = (b - mean) * scale + beta                           # (C_out,)
        folded.append((w_t.astype(jnp.float32),
                       b_f.reshape(1, -1).astype(jnp.float32)))
    return folded


def _reference(x, folded_params):
    """Pure-JAX reference using the same mixed precision as the kernel path."""
    (w1, b1), (w2, b2), (w3, b3), (w4, b4), (w5, b5), (w6, b6) = folded_params
    # Layer 1 in f32.
    h = (x[..., 0:1] * w1[0:1, :] + x[..., 1:2] * w1[1:2, :]
         + x[..., 2:3] * w1[2:3, :] + b1)
    h = jnp.maximum(h, 0.0).astype(jnp.bfloat16)
    for (w, b) in ((w2, b2), (w3, b3), (w4, b4)):
        y = jnp.einsum("bnc,cd->bnd", h, w.astype(jnp.bfloat16),
                       preferred_element_type=jnp.float32) + b
        h = jnp.maximum(y, 0.0).astype(jnp.bfloat16)
    y5 = jnp.einsum("bnc,cd->bnd", h, w5.astype(jnp.bfloat16),
                    preferred_element_type=jnp.float32)
    g = jnp.maximum(jnp.max(y5, axis=1) + b5, 0.0)                # deferred bias/ReLU
    out = jnp.dot(g.astype(jnp.bfloat16), w6.astype(jnp.bfloat16),
                  preferred_element_type=jnp.float32) + b6
    return jnp.maximum(out, 0.0)                                  # (B, F)


if __name__ == "__main__":
    key = jax.random.PRNGKey(0)
    key, k_x = jax.random.split(key)

    B, N = 2, 520                                  # N not a tile multiple -> exercises masking
    x = jax.random.normal(k_x, (B, N, 3), jnp.float32)   # module input: B x N x 3

    params = _init_params(key, FEAT_LEN)
    folded = _fold_bn(params)

    ref = jax.block_until_ready(_reference(x, folded))

    # Small tile: multi-tile accumulation, 2-way split across TensorCores, padded-row masking.
    out_small = jax.block_until_ready(part_pointnet_forward(x, folded, tile_n=128))
    # Default large tile: single-tile path, no padding.
    out_big = jax.block_until_ready(part_pointnet_forward(x, folded))

    for out in (out_small, out_big):
        assert out.shape == (B, FEAT_LEN)
        assert np.allclose(np.asarray(out), np.asarray(ref), rtol=2e-2, atol=2e-2), \
            float(np.max(np.abs(np.asarray(out) - np.asarray(ref))))

    print("KERNEL_OK")
</pallas_src>

<mosaic_0001>
module attributes {stable_mosaic.version = 11 : i64} {
  func.func @kernel(%arg0: i32, %arg1: i32, %arg2: i32, %arg3: memref<1x128x8xf32, #tpu.memory_space<vmem>>, %arg4: memref<8x64xf32, #tpu.memory_space<vmem>>, %arg5: memref<1x64xf32, #tpu.memory_space<vmem>>, %arg6: memref<64x64xbf16, #tpu.memory_space<vmem>>, %arg7: memref<1x64xf32, #tpu.memory_space<vmem>>, %arg8: memref<64x64xbf16, #tpu.memory_space<vmem>>, %arg9: memref<1x64xf32, #tpu.memory_space<vmem>>, %arg10: memref<64x128xbf16, #tpu.memory_space<vmem>>, %arg11: memref<1x128xf32, #tpu.memory_space<vmem>>, %arg12: memref<128x1024xbf16, #tpu.memory_space<vmem>>, %arg13: memref<1x1x1x1024xf32, #tpu.memory_space<vmem>>) attributes {dimension_semantics = [#tpu.dimension_semantics<parallel>, #tpu.dimension_semantics<parallel>, #tpu.dimension_semantics<arbitrary>], iteration_bounds = array<i64: 2, 2, 3>, scalar_prefetch = 0 : i64, scratch_operands = 0 : i64, tpu.core_type = #tpu.core_type<tc>, window_params = [{transform_indices = @transform_0, window_bounds = array<i64: 1, 128, 8>}, {pipeline_mode = #tpu.pipeline_mode<synchronous>, transform_indices = @transform_1, window_bounds = array<i64: 8, 64>}, {pipeline_mode = #tpu.pipeline_mode<synchronous>, transform_indices = @transform_2, window_bounds = array<i64: 1, 64>}, {pipeline_mode = #tpu.pipeline_mode<synchronous>, transform_indices = @transform_3, window_bounds = array<i64: 64, 64>}, {pipeline_mode = #tpu.pipeline_mode<synchronous>, transform_indices = @transform_4, window_bounds = array<i64: 1, 64>}, {pipeline_mode = #tpu.pipeline_mode<synchronous>, transform_indices = @transform_5, window_bounds = array<i64: 64, 64>}, {pipeline_mode = #tpu.pipeline_mode<synchronous>, transform_indices = @transform_6, window_bounds = array<i64: 1, 64>}, {pipeline_mode = #tpu.pipeline_mode<synchronous>, transform_indices = @transform_7, window_bounds = array<i64: 64, 128>}, {pipeline_mode = #tpu.pipeline_mode<synchronous>, transform_indices = @transform_8, window_bounds = array<i64: 1, 128>}, {pipeline_mode = #tpu.pipeline_mode<synchronous>, transform_indices = @transform_9, window_bounds = array<i64: 128, 1024>}, {transform_indices = @transform_10, window_bounds = array<i64: 1, 1, 1, 1024>}]} {
    %c0_i32 = arith.constant 0 : i32
    %0 = arith.cmpi eq, %arg2, %c0_i32 : i32
    %1 = arith.extui %0 : i1 to i32
    %c0_i32_0 = arith.constant 0 : i32
    %2 = arith.cmpi ne, %1, %c0_i32_0 : i32
    scf.if %2 {
      %cst_31 = arith.constant 0xFF800000 : f32
      %49 = vector.broadcast %cst_31 : f32 to vector<1x1x1x1024xf32>
      %c0_32 = arith.constant 0 : index
      %c0_33 = arith.constant 0 : index
      %c0_34 = arith.constant 0 : index
      %c0_35 = arith.constant 0 : index
      %50 = vector.load %arg13[%c0_32, %c0_33, %c0_34, %c0_35] : memref<1x1x1x1024xf32, #tpu.memory_space<vmem>>, vector<1x1x1x1024xf32>
      tpu.vector_store %arg13[%c0_32, %c0_33, %c0_34, %c0_35], %49 {strides = array<i32>} : memref<1x1x1x1024xf32, #tpu.memory_space<vmem>>, vector<1x1x1x1024xf32>,
    } else {
    }
    %c0 = arith.constant 0 : index
    %c0_1 = arith.constant 0 : index
    %c0_2 = arith.constant 0 : index
    %3 = vector.load %arg3[%c0, %c0_1, %c0_2] : memref<1x128x8xf32, #tpu.memory_space<vmem>>, vector<1x128x8xf32>
    %4 = vector.shape_cast %3 : vector<1x128x8xf32> to vector<128x8xf32>
    %c0_3 = arith.constant 0 : index
    %c0_4 = arith.constant 0 : index
    %5 = vector.load %arg4[%c0_3, %c0_4] : memref<8x64xf32, #tpu.memory_space<vmem>>, vector<8x64xf32>
    %cst = arith.constant dense<0.000000e+00> : vector<128x64xf32>
    %6 = tpu.matmul %4, %5, %cst {dimension_numbers = #tpu.dot_dimension_numbers<[1], [0], [0], [1], [0, 0, 1, 1], [], []>} : vector<128x8xf32>, vector<8x64xf32>, vector<128x64xf32> -> vector<128x64xf32>
    %c0_5 = arith.constant 0 : index
    %c0_6 = arith.constant 0 : index
    %7 = vector.load %arg5[%c0_5, %c0_6] : memref<1x64xf32, #tpu.memory_space<vmem>>, vector<1x64xf32>
    %8 = vector.broadcast %7 : vector<1x64xf32> to vector<128x64xf32>
    %9 = arith.addf %6, %8 : vector<128x64xf32>
    %cst_7 = arith.constant 0.000000e+00 : f32
    %10 = vector.broadcast %cst_7 : f32 to vector<128x64xf32>
    %11 = arith.maximumf %9, %10 : vector<128x64xf32>
    %12 = arith.truncf %11 : vector<128x64xf32> to vector<128x64xbf16>
    %c0_8 = arith.constant 0 : index
    %c0_9 = arith.constant 0 : index
    %13 = vector.load %arg6[%c0_8, %c0_9] : memref<64x64xbf16, #tpu.memory_space<vmem>>, vector<64x64xbf16>
    %cst_10 = arith.constant dense<0.000000e+00> : vector<128x64xf32>
    %14 = tpu.matmul %12, %13, %cst_10 {dimension_numbers = #tpu.dot_dimension_numbers<[1], [0], [0], [1], [0, 0, 1, 1], [], []>} : vector<128x64xbf16>, vector<64x64xbf16>, vector<128x64xf32> -> vector<128x64xf32>
    %c0_11 = arith.constant 0 : index
    %c0_12 = arith.constant 0 : index
    %15 = vector.load %arg7[%c0_11, %c0_12] : memref<1x64xf32, #tpu.memory_space<vmem>>, vector<1x64xf32>
    %16 = vector.broadcast %15 : vector<1x64xf32> to vector<128x64xf32>
    %17 = arith.addf %14, %16 : vector<128x64xf32>
    %cst_13 = arith.constant 0.000000e+00 : f32
    %18 = vector.broadcast %cst_13 : f32 to vector<128x64xf32>
    %19 = arith.maximumf %17, %18 : vector<128x64xf32>
    %20 = arith.truncf %19 : vector<128x64xf32> to vector<128x64xbf16>
    %c0_14 = arith.constant 0 : index
    %c0_15 = arith.constant 0 : index
    %21 = vector.load %arg8[%c0_14, %c0_15] : memref<64x64xbf16, #tpu.memory_space<vmem>>, vector<64x64xbf16>
    %cst_16 = arith.constant dense<0.000000e+00> : vector<128x64xf32>
    %22 = tpu.matmul %20, %21, %cst_16 {dimension_numbers = #tpu.dot_dimension_numbers<[1], [0], [0], [1], [0, 0, 1, 1], [], []>} : vector<128x64xbf16>, vector<64x64xbf16>, vector<128x64xf32> -> vector<128x64xf32>
    %c0_17 = arith.constant 0 : index
    %c0_18 = arith.constant 0 : index
    %23 = vector.load %arg9[%c0_17, %c0_18] : memref<1x64xf32, #tpu.memory_space<vmem>>, vector<1x64xf32>
    %24 = vector.broadcast %23 : vector<1x64xf32> to vector<128x64xf32>
    %25 = arith.addf %22, %24 : vector<128x64xf32>
    %cst_19 = arith.constant 0.000000e+00 : f32
    %26 = vector.broadcast %cst_19 : f32 to vector<128x64xf32>
    %27 = arith.maximumf %25, %26 : vector<128x64xf32>
    %28 = arith.truncf %27 : vector<128x64xf32> to vector<128x64xbf16>
    %c0_20 = arith.constant 0 : index
    %c0_21 = arith.constant 0 : index
    %29 = vector.load %arg10[%c0_20, %c0_21] : memref<64x128xbf16, #tpu.memory_space<vmem>>, vector<64x128xbf16>
    %cst_22 = arith.constant dense<0.000000e+00> : vector<128x128xf32>
    %30 = tpu.matmul %28, %29, %cst_22 {dimension_numbers = #tpu.dot_dimension_numbers<[1], [0], [0], [1], [0, 0, 1, 1], [], []>} : vector<128x64xbf16>, vector<64x128xbf16>, vector<128x128xf32> -> vector<128x128xf32>
    %c0_23 = arith.constant 0 : index
    %c0_24 = arith.constant 0 : index
    %31 = vector.load %arg11[%c0_23, %c0_24] : memref<1x128xf32, #tpu.memory_space<vmem>>, vector<1x128xf32>
    %32 = vector.broadcast %31 : vector<1x128xf32> to vector<128x128xf32>
    %33 = arith.addf %30, %32 : vector<128x128xf32>
    %cst_25 = arith.constant 0.000000e+00 : f32
    %34 = vector.broadcast %cst_25 : f32 to vector<128x128xf32>
    %35 = arith.maximumf %33, %34 : vector<128x128xf32>
    %36 = arith.truncf %35 : vector<128x128xf32> to vector<128x128xbf16>
    %c0_26 = arith.constant 0 : index
    %c0_27 = arith.constant 0 : index
    %37 = vector.load %arg12[%c0_26, %c0_27] : memref<128x1024xbf16, #tpu.memory_space<vmem>>, vector<128x1024xbf16>
    %cst_28 = arith.constant dense<0.000000e+00> : vector<128x1024xf32>
    %38 = tpu.matmul %36, %37, %cst_28 {dimension_numbers = #tpu.dot_dimension_numbers<[1], [0], [0], [1], [0, 0, 1, 1], [], []>} : vector<128x128xbf16>, vector<128x1024xbf16>, vector<128x1024xf32> -> vector<128x1024xf32>
    %c3_i32 = arith.constant 3 : i32
    %39 = arith.muli %arg1, %c3_i32 : i32
    %40 = arith.addi %39, %arg2 : i32
    %c1_i32 = arith.constant 1 : i32
    %41 = arith.addi %40, %c1_i32 : i32
    %c128_i32 = arith.constant 128 : i32
    %42 = arith.muli %41, %c128_i32 : i32
    %c520_i32 = arith.constant 520 : i32
    %43 = arith.cmpi sgt, %42, %c520_i32 : i32
    %true = arith.constant true
    %44 = arith.xori %43, %true : i1
    %45 = arith.extui %44 : i1 to i32
    %c0_i32_29 = arith.constant 0 : i32
    %46 = arith.cmpi ne, %45, %c0_i32_29 : i32
    scf.if %46 {
      %c0_31 = arith.constant 0 : index
      %c0_32 = arith.constant 0 : index
      %c0_33 = arith.constant 0 : index
      %c0_34 = arith.constant 0 : index
      %49 = vector.load %arg13[%c0_31, %c0_32, %c0_33, %c0_34] : memref<1x1x1x1024xf32, #tpu.memory_space<vmem>>, vector<1x1x1x1024xf32>
      %50 = vector.shape_cast %49 : vector<1x1x1x1024xf32> to vector<1x1024xf32>
      %cst_35 = arith.constant dense<0xFF800000> : vector<1024xf32>
      %51 = vector.multi_reduction <maximumf>, %38, %cst_35 [0] : vector<128x1024xf32> to vector<1024xf32>
      %52 = vector.shape_cast %51 : vector<1024xf32> to vector<1x1024xf32>
      %53 = arith.maximumf %50, %52 : vector<1x1024xf32>
      %c0_36 = arith.constant 0 : index
      %c0_37 = arith.constant 0 : index
      %c0_38 = arith.constant 0 : index
      %c0_39 = arith.constant 0 : index
      %54 = vector.load %arg13[%c0_36, %c0_37, %c0_38, %c0_39] : memref<1x1x1x1024xf32, #tpu.memory_space<vmem>>, vector<1x1x1x1024xf32>
      %55 = vector.shape_cast %54 : vector<1x1x1x1024xf32> to vector<1x1024xf32>
      %56 = vector.shape_cast %53 : vector<1x1024xf32> to vector<1x1x1x1024xf32>
      tpu.vector_store %arg13[%c0_36, %c0_37, %c0_38, %c0_39], %56 {strides = array<i32>} : memref<1x1x1x1024xf32, #tpu.memory_space<vmem>>, vector<1x1x1x1024xf32>,
    } else {
    }
    %47 = arith.extui %43 : i1 to i32
    %c0_i32_30 = arith.constant 0 : i32
    %48 = arith.cmpi ne, %47, %c0_i32_30 : i32
    scf.if %48 {
      %c128_i32_31 = arith.constant 128 : i32
      %49 = arith.muli %40, %c128_i32_31 : i32
      %50 = tpu.iota {dimensions = array<i32: 0>} : vector<128x1xi32>
      %51 = vector.broadcast %49 : i32 to vector<128x1xi32>
      %52 = arith.addi %51, %50 : vector<128x1xi32>
      %c520_i32_32 = arith.constant 520 : i32
      %53 = vector.broadcast %c520_i32_32 : i32 to vector<128x1xi32>
      %54 = arith.cmpi slt, %52, %53 : vector<128x1xi32>
      %cst_33 = arith.constant 0xFF800000 : f32
      %55 = vector.shape_cast %54 : vector<128x1xi1> to vector<128x1xi1>
      %56 = vector.broadcast %55 : vector<128x1xi1> to vector<128x1024xi1>
      %57 = vector.broadcast %cst_33 : f32 to vector<128x1024xf32>
      %58 = arith.select %56, %38, %57 : vector<128x1024xi1>, vector<128x1024xf32>
      %c0_34 = arith.constant 0 : index
      %c0_35 = arith.constant 0 : index
      %c0_36 = arith.constant 0 : index
      %c0_37 = arith.constant 0 : index
      %59 = vector.load %arg13[%c0_34, %c0_35, %c0_36, %c0_37] : memref<1x1x1x1024xf32, #tpu.memory_space<vmem>>, vector<1x1x1x1024xf32>
      %60 = vector.shape_cast %59 : vector<1x1x1x1024xf32> to vector<1x1024xf32>
      %cst_38 = arith.constant dense<0xFF800000> : vector<1024xf32>
      %61 = vector.multi_reduction <maximumf>, %58, %cst_38 [0] : vector<128x1024xf32> to vector<1024xf32>
      %62 = vector.shape_cast %61 : vector<1024xf32> to vector<1x1024xf32>
      %63 = arith.maximumf %60, %62 : vector<1x1024xf32>
      %c0_39 = arith.constant 0 : index
      %c0_40 = arith.constant 0 : index
      %c0_41 = arith.constant 0 : index
      %c0_42 = arith.constant 0 : index
      %64 = vector.load %arg13[%c0_39, %c0_40, %c0_41, %c0_42] : memref<1x1x1x1024xf32, #tpu.memory_space<vmem>>, vector<1x1x1x1024xf32>
      %65 = vector.shape_cast %64 : vector<1x1x1x1024xf32> to vector<1x1024xf32>
      %66 = vector.shape_cast %63 : vector<1x1024xf32> to vector<1x1x1x1024xf32>
      tpu.vector_store %arg13[%c0_39, %c0_40, %c0_41, %c0_42], %66 {strides = array<i32>} : memref<1x1x1x1024xf32, #tpu.memory_space<vmem>>, vector<1x1x1x1024xf32>,
    } else {
    }
    return
  }
  func.func @transform_0(%arg0: i32, %arg1: i32, %arg2: i32) -> (i32, i32, i32) {
    %c3_i32 = arith.constant 3 : i32
    %0 = arith.muli %arg1, %c3_i32 : i32
    %1 = arith.addi %0, %arg2 : i32
    %c0_i32 = arith.constant 0 : i32
    %c0_i32_0 = arith.constant 0 : i32
    return %arg0, %1, %c0_i32 : i32, i32, i32
  }
  func.func @transform_1(%arg0: i32, %arg1: i32, %arg2: i32) -> (i32, i32) {
    %c0_i32 = arith.constant 0 : i32
    %c0_i32_0 = arith.constant 0 : i32
    %c0_i32_1 = arith.constant 0 : i32
    return %c0_i32, %c0_i32_0 : i32, i32
  }
  func.func @transform_2(%arg0: i32, %arg1: i32, %arg2: i32) -> (i32, i32) {
    %c0_i32 = arith.constant 0 : i32
    %c0_i32_0 = arith.constant 0 : i32
    %c0_i32_1 = arith.constant 0 : i32
    return %c0_i32, %c0_i32_0 : i32, i32
  }
  func.func @transform_3(%arg0: i32, %arg1: i32, %arg2: i32) -> (i32, i32) {
    %c0_i32 = arith.constant 0 : i32
    %c0_i32_0 = arith.constant 0 : i32
    %c0_i32_1 = arith.constant 0 : i32
    return %c0_i32, %c0_i32_0 : i32, i32
  }
  func.func @transform_4(%arg0: i32, %arg1: i32, %arg2: i32) -> (i32, i32) {
    %c0_i32 = arith.constant 0 : i32
    %c0_i32_0 = arith.constant 0 : i32
    %c0_i32_1 = arith.constant 0 : i32
    return %c0_i32, %c0_i32_0 : i32, i32
  }
  func.func @transform_5(%arg0: i32, %arg1: i32, %arg2: i32) -> (i32, i32) {
    %c0_i32 = arith.constant 0 : i32
    %c0_i32_0 = arith.constant 0 : i32
    %c0_i32_1 = arith.constant 0 : i32
    return %c0_i32, %c0_i32_0 : i32, i32
  }
  func.func @transform_6(%arg0: i32, %arg1: i32, %arg2: i32) -> (i32, i32) {
    %c0_i32 = arith.constant 0 : i32
    %c0_i32_0 = arith.constant 0 : i32
    %c0_i32_1 = arith.constant 0 : i32
    return %c0_i32, %c0_i32_0 : i32, i32
  }
  func.func @transform_7(%arg0: i32, %arg1: i32, %arg2: i32) -> (i32, i32) {
    %c0_i32 = arith.constant 0 : i32
    %c0_i32_0 = arith.constant 0 : i32
    %c0_i32_1 = arith.constant 0 : i32
    return %c0_i32, %c0_i32_0 : i32, i32
  }
  func.func @transform_8(%arg0: i32, %arg1: i32, %arg2: i32) -> (i32, i32) {
    %c0_i32 = arith.constant 0 : i32
    %c0_i32_0 = arith.constant 0 : i32
    %c0_i32_1 = arith.constant 0 : i32
    return %c0_i32, %c0_i32_0 : i32, i32
  }
  func.func @transform_9(%arg0: i32, %arg1: i32, %arg2: i32) -> (i32, i32) {
    %c0_i32 = arith.constant 0 : i32
    %c0_i32_0 = arith.constant 0 : i32
    %c0_i32_1 = arith.constant 0 : i32
    return %c0_i32, %c0_i32_0 : i32, i32
  }
  func.func @transform_10(%arg0: i32, %arg1: i32, %arg2: i32) -> (i32, i32, i32, i32) {
    %c0_i32 = arith.constant 0 : i32
    %c0_i32_0 = arith.constant 0 : i32
    %c0_i32_1 = arith.constant 0 : i32
    return %arg0, %arg1, %c0_i32, %c0_i32_0 : i32, i32, i32, i32
  }
}

</mosaic_0001>

<llo_original>
// kernel: tpu_custom_call.1
$region0: #{tpu_custom_call.1}
  #allocation0 [shape = 'u32[]', space=smem, size = 0x4, offset = 0x4, fixed_abs, tag = 'smem constant byte address 0x4 - core index']
  #allocation1 [shape = 'u32[72,128]{1,0:T(1,128)}', space=vmem, size = 0x9000, scoped, tag = 'internal scratch']
  %s0 = inlined_call_operand.vmem [shape: f32[2,768,8], index: 0, kind: input, shape index: {}]
  %s1 = inlined_call_operand.vmem [shape: f32[8,64], index: 1, kind: input, shape index: {}]
  %s2 = inlined_call_operand.vmem [shape: f32[1,64], index: 2, kind: input, shape index: {}]
  %s3 = inlined_call_operand.vmem [shape: bf16[64,64], index: 3, kind: input, shape index: {}]
  %s4 = inlined_call_operand.vmem [shape: f32[1,64], index: 4, kind: input, shape index: {}]
  %s5 = inlined_call_operand.vmem [shape: bf16[64,64], index: 5, kind: input, shape index: {}]
  %s6 = inlined_call_operand.vmem [shape: f32[1,64], index: 6, kind: input, shape index: {}]
  %s7 = inlined_call_operand.vmem [shape: bf16[64,128], index: 7, kind: input, shape index: {}]
  %s8 = inlined_call_operand.vmem [shape: f32[1,128], index: 8, kind: input, shape index: {}]
  %s9 = inlined_call_operand.vmem [shape: bf16[128,1024], index: 9, kind: input, shape index: {}]
  %s10 = inlined_call_operand.hbm [shape: f32[2,2,1,1024], index: 10, kind: output, shape index: {}]
  %s11 = sld [smem:[#allocation0]]
  $region85: #{tpu_custom_call.1} parent=0
    _
  %s13 = ssub.s32 1, %s11
  %s14 = scalar_select 0, %s13, %s11
  $region1: #{tpu_custom_call.1} parent=0
    #allocation2 [shape = 'u8[8192]{0}', space=vmem, size = 0x2000, scoped, tag = 'output window, operand 0']
    #allocation3 [shape = 's32[2]{0}', space=sflag, size = 0x8, scoped, tag = 'scoped memory for tpu_custom_call.1']
    %15 = vsyncpa [#allocation3], 0
    %s16 = scalar_lea.sflag [#allocation3], 1
    %17 = vsyncpa %s16, 0
    loop: start=0, step=1, limit=14
    $region2: #{tpu_custom_call.1} parent=1 // loop_pre_header
      _
    $region3: #{tpu_custom_call.1} parent=1 // loop_header
      %s19 = sphi 0, %s23
      %p20 = scmp.ge.s32.totalorder %s19, 14
      %s26 = sphi 0, %s45
      %s27 = sphi 0, %s41
      %s28 = sphi 0, %s37
      %s29 = sphi 0, %s26
      %s30 = sphi 0, %s27
      %s31 = sphi 0, %s28
      %s32 = sphi 0, %s29
      %s33 = sphi 0, %s30
      %s34 = sphi 0, %s31
      %s54 = sphi 0, %s56
      %s57 = sphi 0, %s54
      %s58 = sphi 0, %s57
      %s74 = sphi 0, %s58
      %s78 = sphi 0, %s78
      %s80 = sphi 0, %s78
      %s81 = sphi 0, %s80
      %s95 = sphi 0, %s81
      %s99 = sphi 0, %s99
      %s101 = sphi 0, %s99
      %s102 = sphi 0, %s101
      %s116 = sphi 0, %s102
      %s120 = sphi 0, %s120
      %s122 = sphi 0, %s120
      %s123 = sphi 0, %s122
      %s137 = sphi 0, %s123
      %s141 = sphi 0, %s141
      %s143 = sphi 0, %s141
      %s144 = sphi 0, %s143
      %s158 = sphi 0, %s144
      %s162 = sphi 0, %s162
      %s164 = sphi 0, %s162
      %s165 = sphi 0, %s164
      %s179 = sphi 0, %s165
      %s183 = sphi 0, %s183
      %s185 = sphi 0, %s183
      %s186 = sphi 0, %s185
      %s200 = sphi 0, %s186
      %s204 = sphi 0, %s204
      %s206 = sphi 0, %s204
      %s207 = sphi 0, %s206
      %s221 = sphi 0, %s207
      %s225 = sphi 0, %s225
      %s227 = sphi 0, %s225
      %s228 = sphi 0, %s227
      %s242 = sphi 0, %s228
      %s246 = sphi 0, %s246
      %s248 = sphi 0, %s246
      %s249 = sphi 0, %s248
      %s263 = sphi 0, %s249
      %s271 = sphi 0, %s273
      %s274 = sphi 0, %s271
      %s275 = sphi 0, %s274
      %s291 = sphi 0, %s275
    $region4: #{tpu_custom_call.1} parent=1 // loop_header_branch
      %22 = sbr.rel (%p20) target = $region8
    $region5: #{tpu_custom_call.1} parent=1 // loop_body
      %s24 = ssub.s32 %s19, 1
      %s25 = ssub.s32 %s19, 2
      %s35 = sadd.s32 1, %s28
      %p36 = scmp.ge.s32.totalorder %s35, 3
      %s37 = scalar_select %p36, 0, %s35
      %s38 = sadd.s32 1, %s27
      %s39 = scalar_select %p36, %s38, %s27
      %p40 = scmp.ge.s32.totalorder %s39, 2
      %s41 = scalar_select %p40, 0, %s39
      %s42 = sadd.s32 1, %s26
      %s43 = scalar_select %p40, %s42, %s26
      %p44 = scmp.ge.s32.totalorder %s43, 2
      %s45 = scalar_select %p44, 0, %s43
      %s46 = smul.u32 %s27, 3
      %s47 = sadd.s32 %s46, %s28
      %s48 = smul.u32 %s41, 3
      %s49 = sadd.s32 %s48, %s37
      %s50 = ssub.s32 %s26, %s45
      %s51 = ssub.s32 %s47, %s49
      %s52 = sor.u32 %s50, %s51
      %p53 = scmp.eq.s32.totalorder %s52, 0
      %s55 = sadd.s32 %s54, 1
      %s56 = scalar_select %p53, %s54, %s55
      %p59 = pneg %p53
      %p60 = scmp.eq.s32.totalorder %s19, 11
      %p61 = por %p59, %p60
      %p62 = scmp.ne.s32.totalorder %s54, %s57
      %p63 = scmp.eq.s32.totalorder %s19, 0
      %p64 = por %p62, %p63
      %p65 = scmp.ne.s32.totalorder %s54, %s57
      %p66 = scmp.eq.s32.totalorder %s24, 11
      %p67 = por %p65, %p66
      %p68 = scmp.ne.s32.totalorder %s57, %s58
      %p69 = scmp.eq.s32.totalorder %s24, 0
      %p70 = por %p68, %p69
      %p71 = scmp.ne.s32.totalorder %s57, %s58
      %p72 = scmp.eq.s32.totalorder %s25, 11
      %p73 = por %p71, %p72
      %p75 = scmp.ne.s32.totalorder %s58, %s74
      %p76 = scmp.eq.s32.totalorder %s25, 0
      %p77 = por %p75, %p76
      %s79 = sadd.s32 %s78, 1
      %p82 = scmp.eq.s32.totalorder %s19, 11
      %p83 = scmp.ne.s32.totalorder %s78, %s80
      %p84 = scmp.eq.s32.totalorder %s19, 0
      %p85 = por %p83, %p84
      %p86 = scmp.ne.s32.totalorder %s78, %s80
      %p87 = scmp.eq.s32.totalorder %s24, 11
      %p88 = por %p86, %p87
      %p89 = scmp.ne.s32.totalorder %s80, %s81
      %p90 = scmp.eq.s32.totalorder %s24, 0
      %p91 = por %p89, %p90
      %p92 = scmp.ne.s32.totalorder %s80, %s81
      %p93 = scmp.eq.s32.totalorder %s25, 11
      %p94 = por %p92, %p93
      %p96 = scmp.ne.s32.totalorder %s81, %s95
      %p97 = scmp.eq.s32.totalorder %s25, 0
      %p98 = por %p96, %p97
      %s100 = sadd.s32 %s99, 1
      %p103 = scmp.eq.s32.totalorder %s19, 11
      %p104 = scmp.ne.s32.totalorder %s99, %s101
      %p105 = scmp.eq.s32.totalorder %s19, 0
      %p106 = por %p104, %p105
      %p107 = scmp.ne.s32.totalorder %s99, %s101
      %p108 = scmp.eq.s32.totalorder %s24, 11
      %p109 = por %p107, %p108
      %p110 = scmp.ne.s32.totalorder %s101, %s102
      %p111 = scmp.eq.s32.totalorder %s24, 0
      %p112 = por %p110, %p111
      %p113 = scmp.ne.s32.totalorder %s101, %s102
      %p114 = scmp.eq.s32.totalorder %s25, 11
      %p115 = por %p113, %p114
      %p117 = scmp.ne.s32.totalorder %s102, %s116
      %p118 = scmp.eq.s32.totalorder %s25, 0
      %p119 = por %p117, %p118
      %s121 = sadd.s32 %s120, 1
      %p124 = scmp.eq.s32.totalorder %s19, 11
      %p125 = scmp.ne.s32.totalorder %s120, %s122
      %p126 = scmp.eq.s32.totalorder %s19, 0
      %p127 = por %p125, %p126
      %p128 = scmp.ne.s32.totalorder %s120, %s122
      %p129 = scmp.eq.s32.totalorder %s24, 11
      %p130 = por %p128, %p129
      %p131 = scmp.ne.s32.totalorder %s122, %s123
      %p132 = scmp.eq.s32.totalorder %s24, 0
      %p133 = por %p131, %p132
      %p134 = scmp.ne.s32.totalorder %s122, %s123
      %p135 = scmp.eq.s32.totalorder %s25, 11
      %p136 = por %p134, %p135
      %p138 = scmp.ne.s32.totalorder %s123, %s137
      %p139 = scmp.eq.s32.totalorder %s25, 0
      %p140 = por %p138, %p139
      %s142 = sadd.s32 %s141, 1
      %p145 = scmp.eq.s32.totalorder %s19, 11
      %p146 = scmp.ne.s32.totalorder %s141, %s143
      %p147 = scmp.eq.s32.totalorder %s19, 0
      %p148 = por %p146, %p147
      %p149 = scmp.ne.s32.totalorder %s141, %s143
      %p150 = scmp.eq.s32.totalorder %s24, 11
      %p151 = por %p149, %p150
      %p152 = scmp.ne.s32.totalorder %s143, %s144
      %p153 = scmp.eq.s32.totalorder %s24, 0
      %p154 = por %p152, %p153
      %p155 = scmp.ne.s32.totalorder %s143, %s144
      %p156 = scmp.eq.s32.totalorder %s25, 11
      %p157 = por %p155, %p156
      %p159 = scmp.ne.s32.totalorder %s144, %s158
      %p160 = scmp.eq.s32.totalorder %s25, 0
      %p161 = por %p159, %p160
      %s163 = sadd.s32 %s162, 1
      %p166 = scmp.eq.s32.totalorder %s19, 11
      %p167 = scmp.ne.s32.totalorder %s162, %s164
      %p168 = scmp.eq.s32.totalorder %s19, 0
      %p169 = por %p167, %p168
      %p170 = scmp.ne.s32.totalorder %s162, %s164
      %p171 = scmp.eq.s32.totalorder %s24, 11
      %p172 = por %p170, %p171
      %p173 = scmp.ne.s32.totalorder %s164, %s165
      %p174 = scmp.eq.s32.totalorder %s24, 0
      %p175 = por %p173, %p174
      %p176 = scmp.ne.s32.totalorder %s164, %s165
      %p177 = scmp.eq.s32.totalorder %s25, 11
      %p178 = por %p176, %p177
      %p180 = scmp.ne.s32.totalorder %s165, %s179
      %p181 = scmp.eq.s32.totalorder %s25, 0
      %p182 = por %p180, %p181
      %s184 = sadd.s32 %s183, 1
      %p187 = scmp.eq.s32.totalorder %s19, 11
      %p188 = scmp.ne.s32.totalorder %s183, %s185
      %p189 = scmp.eq.s32.totalorder %s19, 0
      %p190 = por %p188, %p189
      %p191 = scmp.ne.s32.totalorder %s183, %s185
      %p192 = scmp.eq.s32.totalorder %s24, 11
      %p193 = por %p191, %p192
      %p194 = scmp.ne.s32.totalorder %s185, %s186
      %p195 = scmp.eq.s32.totalorder %s24, 0
      %p196 = por %p194, %p195
      %p197 = scmp.ne.s32.totalorder %s185, %s186
      %p198 = scmp.eq.s32.totalorder %s25, 11
      %p199 = por %p197, %p198
      %p201 = scmp.ne.s32.totalorder %s186, %s200
      %p202 = scmp.eq.s32.totalorder %s25, 0
      %p203 = por %p201, %p202
      %s205 = sadd.s32 %s204, 1
      %p208 = scmp.eq.s32.totalorder %s19, 11
      %p209 = scmp.ne.s32.totalorder %s204, %s206
      %p210 = scmp.eq.s32.totalorder %s19, 0
      %p211 = por %p209, %p210
      %p212 = scmp.ne.s32.totalorder %s204, %s206
      %p213 = scmp.eq.s32.totalorder %s24, 11
      %p214 = por %p212, %p213
      %p215 = scmp.ne.s32.totalorder %s206, %s207
      %p216 = scmp.eq.s32.totalorder %s24, 0
      %p217 = por %p215, %p216
      %p218 = scmp.ne.s32.totalorder %s206, %s207
      %p219 = scmp.eq.s32.totalorder %s25, 11
      %p220 = por %p218, %p219
      %p222 = scmp.ne.s32.totalorder %s207, %s221
      %p223 = scmp.eq.s32.totalorder %s25, 0
      %p224 = por %p222, %p223
      %s226 = sadd.s32 %s225, 1
      %p229 = scmp.eq.s32.totalorder %s19, 11
      %p230 = scmp.ne.s32.totalorder %s225, %s227
      %p231 = scmp.eq.s32.totalorder %s19, 0
      %p232 = por %p230, %p231
      %p233 = scmp.ne.s32.totalorder %s225, %s227
      %p234 = scmp.eq.s32.totalorder %s24, 11
      %p235 = por %p233, %p234
      %p236 = scmp.ne.s32.totalorder %s227, %s228
      %p237 = scmp.eq.s32.totalorder %s24, 0
      %p238 = por %p236, %p237
      %p239 = scmp.ne.s32.totalorder %s227, %s228
      %p240 = scmp.eq.s32.totalorder %s25, 11
      %p241 = por %p239, %p240
      %p243 = scmp.ne.s32.totalorder %s228, %s242
      %p244 = scmp.eq.s32.totalorder %s25, 0
      %p245 = por %p243, %p244
      %s247 = sadd.s32 %s246, 1
      %p250 = scmp.eq.s32.totalorder %s19, 11
      %p251 = scmp.ne.s32.totalorder %s246, %s248
      %p252 = scmp.eq.s32.totalorder %s19, 0
      %p253 = por %p251, %p252
      %p254 = scmp.ne.s32.totalorder %s246, %s248
      %p255 = scmp.eq.s32.totalorder %s24, 11
      %p256 = por %p254, %p255
      %p257 = scmp.ne.s32.totalorder %s248, %s249
      %p258 = scmp.eq.s32.totalorder %s24, 0
      %p259 = por %p257, %p258
      %p260 = scmp.ne.s32.totalorder %s248, %s249
      %p261 = scmp.eq.s32.totalorder %s25, 11
      %p262 = por %p260, %p261
      %p264 = scmp.ne.s32.totalorder %s249, %s263
      %p265 = scmp.eq.s32.totalorder %s25, 0
      %p266 = por %p264, %p265
      %s267 = ssub.s32 %s26, %s45
      %s268 = ssub.s32 %s27, %s41
      %s269 = sor.u32 %s267, %s268
      %p270 = scmp.eq.s32.totalorder %s269, 0
      %s272 = sadd.s32 %s271, 1
      %s273 = scalar_select %p270, %s271, %s272
      %p276 = pneg %p270
      %p277 = scmp.eq.s32.totalorder %s19, 11
      %p278 = por %p276, %p277
      %p279 = scmp.ne.s32.totalorder %s271, %s274
      %p280 = scmp.eq.s32.totalorder %s19, 0
      %p281 = por %p279, %p280
      %p282 = scmp.ne.s32.totalorder %s271, %s274
      %p283 = scmp.eq.s32.totalorder %s24, 11
      %p284 = por %p282, %p283
      %p285 = scmp.ne.s32.totalorder %s274, %s275
      %p286 = scmp.eq.s32.totalorder %s24, 0
      %p287 = por %p285, %p286
      %p288 = scmp.ne.s32.totalorder %s274, %s275
      %p289 = scmp.eq.s32.totalorder %s25, 11
      %p290 = por %p288, %p289
      %p292 = scmp.ne.s32.totalorder %s275, %s291
      %p293 = scmp.eq.s32.totalorder %s25, 0
      %p294 = por %p292, %p293
      %p295 = scmp.le.s32.totalorder 1, %s19
      %p296 = scmp.lt.s32.totalorder %s19, 13
      %p297 = pnand %p295, %p296
      %p298 = pneg %p297
      // Predicated region
      $region9: #{tpu_custom_call.1} parent=5 // pred_check
        _
      $region10: #{tpu_custom_call.1} parent=5 // pred_check_branch
        %300 = sbr.rel (%p297) target = $region12
      $region11: #{tpu_custom_call.1} parent=5 // pred_region
        %s301 = ssub.s32 %s19, 1
        // Predicated region
        $region13: #{tpu_custom_call.1} parent=11 // pred_check
          %p302 = pneg %p91
        $region14: #{tpu_custom_call.1} parent=11 // pred_check_branch
          %304 = sbr.rel (%p302) target = $region16
        $region15: #{tpu_custom_call.1} parent=11 // pred_region
          _
        $region16: #{tpu_custom_call.1} parent=11 // pred_fallthru
          _
        // Predicated region
        $region17: #{tpu_custom_call.1} parent=11 // pred_check
          %p305 = pneg %p112
        $region18: #{tpu_custom_call.1} parent=11 // pred_check_branch
          %307 = sbr.rel (%p305) target = $region20
        $region19: #{tpu_custom_call.1} parent=11 // pred_region
          _
        $region20: #{tpu_custom_call.1} parent=11 // pred_fallthru
          _
        // Predicated region
        $region21: #{tpu_custom_call.1} parent=11 // pred_check
          %p308 = pneg %p133
        $region22: #{tpu_custom_call.1} parent=11 // pred_check_branch
          %310 = sbr.rel (%p308) target = $region24
        $region23: #{tpu_custom_call.1} parent=11 // pred_region
          _
        $region24: #{tpu_custom_call.1} parent=11 // pred_fallthru
          _
        // Predicated region
        $region25: #{tpu_custom_call.1} parent=11 // pred_check
          %p311 = pneg %p154
        $region26: #{tpu_custom_call.1} parent=11 // pred_check_branch
          %313 = sbr.rel (%p311) target = $region28
        $region27: #{tpu_custom_call.1} parent=11 // pred_region
          _
        $region28: #{tpu_custom_call.1} parent=11 // pred_fallthru
          _
        // Predicated region
        $region29: #{tpu_custom_call.1} parent=11 // pred_check
          %p314 = pneg %p175
        $region30: #{tpu_custom_call.1} parent=11 // pred_check_branch
          %316 = sbr.rel (%p314) target = $region32
        $region31: #{tpu_custom_call.1} parent=11 // pred_region
          _
        $region32: #{tpu_custom_call.1} parent=11 // pred_fallthru
          _
        // Predicated region
        $region33: #{tpu_custom_call.1} parent=11 // pred_check
          %p317 = pneg %p196
        $region34: #{tpu_custom_call.1} parent=11 // pred_check_branch
          %319 = sbr.rel (%p317) target = $region36
        $region35: #{tpu_custom_call.1} parent=11 // pred_region
          _
        $region36: #{tpu_custom_call.1} parent=11 // pred_fallthru
          _
        // Predicated region
        $region37: #{tpu_custom_call.1} parent=11 // pred_check
          %p320 = pneg %p217
        $region38: #{tpu_custom_call.1} parent=11 // pred_check_branch
          %322 = sbr.rel (%p320) target = $region40
        $region39: #{tpu_custom_call.1} parent=11 // pred_region
          _
        $region40: #{tpu_custom_call.1} parent=11 // pred_fallthru
          _
        // Predicated region
        $region41: #{tpu_custom_call.1} parent=11 // pred_check
          %p323 = pneg %p238
        $region42: #{tpu_custom_call.1} parent=11 // pred_check_branch
          %325 = sbr.rel (%p323) target = $region44
        $region43: #{tpu_custom_call.1} parent=11 // pred_region
          _
        $region44: #{tpu_custom_call.1} parent=11 // pred_fallthru
          _
        // Predicated region
        $region45: #{tpu_custom_call.1} parent=11 // pred_check
          %p326 = pneg %p259
        $region46: #{tpu_custom_call.1} parent=11 // pred_check_branch
          %328 = sbr.rel (%p326) target = $region48
        $region47: #{tpu_custom_call.1} parent=11 // pred_region
          _
        $region48: #{tpu_custom_call.1} parent=11 // pred_fallthru
          _
      $region12: #{tpu_custom_call.1} parent=5 // pred_fallthru
        _
      %p329 = scmp.lt.s32.totalorder %s19, 12
      // Predicated region
      $region49: #{tpu_custom_call.1} parent=5 // pred_check
        %p330 = pneg %p329
      $region50: #{tpu_custom_call.1} parent=5 // pred_check_branch
        %332 = sbr.rel (%p330) target = $region52
      $region51: #{tpu_custom_call.1} parent=5 // pred_region
        // Predicated region
        $region53: #{tpu_custom_call.1} parent=51 // pred_check
          %p333 = pneg %p64
        $region54: #{tpu_custom_call.1} parent=51 // pred_check_branch
          %335 = sbr.rel (%p333) target = $region56
        $region55: #{tpu_custom_call.1} parent=51 // pred_region
          %s336 = smul.u32 %s27, 3
          %s337 = sadd.s32 %s336, %s28
          %s338 = smul.u32 16, %s337
          %p339 = scmp.lt.s32.totalorder %s26, 1
          %s340 = scalar_select %p339, %s26, 1
          %p341 = scmp.lt.s32.totalorder %s338, 95
          %s342 = scalar_select %p341, %s338, 95
          %s343 = smul.addr %s340, 96
          %s344 = sadd.s32 %s342, %s343
          %s345 = smul.addr %s344, 8
          %s346 = scalar_lea.vmem %s0, %s345
          %s347 = smul.u32 %s27, 3
          %s348 = sadd.s32 %s347, %s28
          %s349 = smul.u32 16, %s348
        $region56: #{tpu_custom_call.1} parent=51 // pred_fallthru
          _
      $region52: #{tpu_custom_call.1} parent=5 // pred_fallthru
        _
      %p350 = scmp.le.s32.totalorder 1, %s19
      %p351 = scmp.lt.s32.totalorder %s19, 13
      %p352 = pnand %p350, %p351
      %p353 = pneg %p352
      // Predicated region
      $region57: #{tpu_custom_call.1} parent=5 // pred_check
        _
      $region58: #{tpu_custom_call.1} parent=5 // pred_check_branch
        %355 = sbr.rel (%p352) target = $region60
      $region59: #{tpu_custom_call.1} parent=5 // pred_region
        %s356 = ssub.s32 %s19, 1
        %s357 = smul.u32 %s30, 3
        %s358 = sadd.s32 %s357, %s31
        %s359 = smul.u32 16, %s358
        %p360 = scmp.lt.s32.totalorder %s29, 1
        %s361 = scalar_select %p360, %s29, 1
        %p362 = scmp.lt.s32.totalorder %s359, 95
        %s363 = scalar_select %p362, %s359, 95
        %s364 = smul.addr %s361, 96
        %s365 = sadd.s32 %s363, %s364
        %s366 = smul.addr %s365, 8
        %s367 = scalar_lea.vmem %s0, %s366
        %p368 = pneg %p70
        %p369 = pneg %p67
        %p370 = pneg %p91
        %p371 = pneg %p88
        %p372 = pneg %p112
        %p373 = pneg %p109
        %p374 = pneg %p133
        %p375 = pneg %p130
        %p376 = pneg %p154
        %p377 = pneg %p151
        %p378 = pneg %p175
        %p379 = pneg %p172
        %p380 = pneg %p196
        %p381 = pneg %p193
        %p382 = pneg %p217
        %p383 = pneg %p214
        %p384 = pneg %p238
        %p385 = pneg %p235
        %p386 = pneg %p259
        %p387 = pneg %p256
        %p388 = pneg %p287
        %p389 = pneg %p284
        %s390 = sand.u32 %s274, 1
        %s391 = scalar_lea.sflag [#allocation3], %s390
        %s392 = sand.u32 %s274, 1
        %s393 = smul.addr %s392, 8
        %s394 = scalar_lea.vmem [#allocation2], %s393
        %s395 = smul.u32 %s30, 3
        %s396 = sadd.s32 %s395, %s31
        %s397 = smul.u32 16, %s396
        %p398 = scmp.lt.s32.totalorder %s29, 1
        %s399 = scalar_select %p398, %s29, 1
        %p400 = scmp.lt.s32.totalorder %s397, 95
        %s401 = scalar_select %p400, %s397, 95
        %s402 = smul.addr %s399, 96
        %s403 = sadd.s32 %s401, %s402
        %s404 = smul.addr %s403, 8
        %s405 = scalar_lea.vmem %s0, %s404
        %s406 = smul.u32 %s30, 3
        %s407 = sadd.s32 %s406, %s31
        %s408 = smul.u32 16, %s407
        %p410 = scmp.eq.s32.totalorder %s31, 0
        // Predicated region
        $region61: #{tpu_custom_call.1} parent=59 // pred_check
          %p411 = pneg %p410
        $region62: #{tpu_custom_call.1} parent=59 // pred_check_branch
          %413 = sbr.rel (%p411) target = $region64
        $region63: #{tpu_custom_call.1} parent=59 // pred_region
          %414 = vst [vmem:[%s394] sm:$0xff] -inf
        $region64: #{tpu_custom_call.1} parent=59 // pred_fallthru
          _
        %v415 = vld [vmem:[%s405] sm:$0xff]
        %v416 = vld [vmem:[%s405 + $0x8] sm:$0xff]
        %v417 = vld [vmem:[%s405 + $0x10] sm:$0xff]
        %v418 = vld [vmem:[%s405 + $0x18] sm:$0xff]
        %v419 = vld [vmem:[%s405 + $0x20] sm:$0xff]
        %v420 = vld [vmem:[%s405 + $0x28] sm:$0xff]
        %v421 = vld [vmem:[%s405 + $0x30] sm:$0xff]
        %v422 = vld [vmem:[%s405 + $0x38] sm:$0xff]
        %v423 = vld [vmem:[%s405 + $0x40] sm:$0xff]
        %v424 = vld [vmem:[%s405 + $0x48] sm:$0xff]
        %v425 = vld [vmem:[%s405 + $0x50] sm:$0xff]
        %v426 = vld [vmem:[%s405 + $0x58] sm:$0xff]
        %v427 = vld [vmem:[%s405 + $0x60] sm:$0xff]
        %v428 = vld [vmem:[%s405 + $0x68] sm:$0xff]
        %v429 = vld [vmem:[%s405 + $0x70] sm:$0xff]
        %v430 = vld [vmem:[%s405 + $0x78] sm:$0xff]
        %v431 = vld [vmem:[%s1] sm:$0xff]
        %v432 = vld [vmem:[%s2] sm:$0x1]
        %v434 = vperm.slane %v432, 0
        %vm436 = vcmask 64512
        %v438 = vsel %vm436, %v415, 0
        %v441 = vsel %vm436, %v416, 0
        %v444 = vsel %vm436, %v417, 0
        %v447 = vsel %vm436, %v418, 0
        %v450 = vsel %vm436, %v419, 0
        %v453 = vsel %vm436, %v420, 0
        %v456 = vsel %vm436, %v421, 0
        %v459 = vsel %vm436, %v422, 0
        %v462 = vsel %vm436, %v423, 0
        %v465 = vsel %vm436, %v424, 0
        %v468 = vsel %vm436, %v425, 0
        %v471 = vsel %vm436, %v426, 0
        %v474 = vsel %vm436, %v427, 0
        %v477 = vsel %vm436, %v428, 0
        %v480 = vsel %vm436, %v429, 0
        %v483 = vsel %vm436, %v430, 0
        %485 = vmatpush.msra.mxu0 0.0
        %486 = vmatpush.msra.mxu0 0.0
        %487 = vmatpush.msra.mxu0 0.0
        %488 = vmatpush.msra.mxu0 0.0
        %489 = vmatpush.msra.mxu0 0.0
        %490 = vmatpush.msra.mxu0 0.0
        %491 = vmatpush.msra.mxu0 0.0
        %492 = vmatpush.msra.mxu0 0.0
        %493 = vmatpush.msra.mxu0 0.0
        %494 = vmatpush.msra.mxu0 0.0
        %495 = vmatpush.msra.mxu0 0.0
        %496 = vmatpush.msra.mxu0 0.0
        %497 = vmatpush.msra.mxu0 0.0
        %498 = vmatpush.msra.mxu0 0.0
        %499 = vmatpush.msra.mxu0 0.0
        %500 = vmatpush.msra.mxu0 %v431
        %501 = vmatmul.f32.gmra.mxu0 %v438
        %v502 = vpop.f32.mrf.mxu0
        %v503 = vadd.f32 %v434, %v502
        %504 = vmatmul.f32.gmra.mxu0 %v441
        %v505 = vpop.f32.mrf.mxu0
        %v506 = vadd.f32 %v434, %v505
        %507 = vmatmul.f32.gmra.mxu0 %v444
        %v508 = vpop.f32.mrf.mxu0
        %v509 = vadd.f32 %v434, %v508
        %510 = vmatmul.f32.gmra.mxu0 %v447
        %v511 = vpop.f32.mrf.mxu0
        %v512 = vadd.f32 %v434, %v511
        %513 = vmatmul.f32.gmra.mxu0 %v450
        %v514 = vpop.f32.mrf.mxu0
        %v515 = vadd.f32 %v434, %v514
        %516 = vmatmul.f32.gmra.mxu0 %v453
        %v517 = vpop.f32.mrf.mxu0
        %v518 = vadd.f32 %v434, %v517
        %519 = vmatmul.f32.gmra.mxu0 %v456
        %v520 = vpop.f32.mrf.mxu0
        %v521 = vadd.f32 %v434, %v520
        %522 = vmatmul.f32.gmra.mxu0 %v459
        %v523 = vpop.f32.mrf.mxu0
        %v524 = vadd.f32 %v434, %v523
        %525 = vmatmul.f32.gmra.mxu0 %v462
        %v526 = vpop.f32.mrf.mxu0
        %v527 = vadd.f32 %v434, %v526
        %528 = vmatmul.f32.gmra.mxu0 %v465
        %v529 = vpop.f32.mrf.mxu0
        %v530 = vadd.f32 %v434, %v529
        %531 = vmatmul.f32.gmra.mxu0 %v468
        %v532 = vpop.f32.mrf.mxu0
        %v533 = vadd.f32 %v434, %v532
        %534 = vmatmul.f32.gmra.mxu0 %v471
        %v535 = vpop.f32.mrf.mxu0
        %v536 = vadd.f32 %v434, %v535
        %537 = vmatmul.f32.gmra.mxu0 %v474
        %v538 = vpop.f32.mrf.mxu0
        %v539 = vadd.f32 %v434, %v538
        %540 = vmatmul.f32.gmra.mxu0 %v477
        %v541 = vpop.f32.mrf.mxu0
        %v542 = vadd.f32 %v434, %v541
        %543 = vmatmul.f32.gmra.mxu0 %v480
        %v544 = vpop.f32.mrf.mxu0
        %v545 = vadd.f32 %v434, %v544
        %546 = vmatmul.f32.gmra.mxu0 %v483
        %v547 = vpop.f32.mrf.mxu0
        %v548 = vadd.f32 %v434, %v547
        %549 = vdwg.mxu0
        %v550 = vmax.f32 %v503, 0.0
        %v551 = vmax.f32 %v506, 0.0
        %v552 = vmax.f32 %v509, 0.0
        %v553 = vmax.f32 %v512, 0.0
        %v554 = vmax.f32 %v515, 0.0
        %v555 = vmax.f32 %v518, 0.0
        %v556 = vmax.f32 %v521, 0.0
        %v557 = vmax.f32 %v524, 0.0
        %v558 = vmax.f32 %v527, 0.0
        %v559 = vmax.f32 %v530, 0.0
        %v560 = vmax.f32 %v533, 0.0
        %v561 = vmax.f32 %v536, 0.0
        %v562 = vmax.f32 %v539, 0.0
        %v563 = vmax.f32 %v542, 0.0
        %v564 = vmax.f32 %v545, 0.0
        %v565 = vmax.f32 %v548, 0.0
        %v566 = vpack.c.bf16 %v551, %v550
        %v567 = vpack.c.bf16 %v553, %v552
        %v568 = vpack.c.bf16 %v555, %v554
        %v569 = vpack.c.bf16 %v557, %v556
        %v570 = vpack.c.bf16 %v559, %v558
        %v571 = vpack.c.bf16 %v561, %v560
        %v572 = vpack.c.bf16 %v563, %v562
        %v573 = vpack.c.bf16 %v565, %v564
        %v574 = vld [vmem:[%s3] sm:$0xf]
        %v575 = vld [vmem:[%s3 + $0x4] sm:$0xf]
        %v576 = vld [vmem:[%s3 + $0x8] sm:$0xf]
        %v577 = vld [vmem:[%s3 + $0xc] sm:$0xf]
        %v578 = vld [vmem:[%s3 + $0x10] sm:$0xf]
        %v579 = vld [vmem:[%s3 + $0x14] sm:$0xf]
        %v580 = vld [vmem:[%s3 + $0x18] sm:$0xf]
        %v581 = vld [vmem:[%s3 + $0x1c] sm:$0xf]
        %v582 = vld [vmem:[%s4] sm:$0x1]
        %v584 = vperm.slane %v582, 0
        %v594 = vunpack.c.l.b16 %v574
        %v595 = vunpack.c.l.b16 %v575
        %v596 = vunpack.c.l.b16 %v576
        %v597 = vunpack.c.l.b16 %v577
        %v598 = vunpack.c.l.b16 %v578
        %v599 = vunpack.c.l.b16 %v579
        %v600 = vunpack.c.l.b16 %v580
        %v601 = vunpack.c.l.b16 %v581
        %v602 = vpack.c.b16 %v595, %v594
        %v603 = vpack.c.b16 %v597, %v596
        %v604 = vpack.c.b16 %v599, %v598
        %v605 = vpack.c.b16 %v601, %v600
        %vm610 = vcmask 523264
        %v612 = vsel %vm610, %v566, 0
        %v615 = vsel %vm610, %v567, 0
        %v618 = vsel %vm610, %v568, 0
        %v621 = vsel %vm610, %v569, 0
        %v624 = vsel %vm610, %v570, 0
        %v627 = vsel %vm610, %v571, 0
        %v630 = vsel %vm610, %v572, 0
        %v633 = vsel %vm610, %v573, 0
        %635 = vmatpush.bf16.msra.mxu0 0
        %636 = vmatpush.bf16.msra.mxu0 0
        %637 = vmatpush.bf16.msra.mxu0 0
        %638 = vmatpush.bf16.msra.mxu0 0
        %639 = vmatpush.bf16.msra.mxu0 %v605
        %640 = vmatpush.bf16.msra.mxu0 %v604
        %641 = vmatpush.bf16.msra.mxu0 %v603
        %642 = vmatpush.bf16.msra.mxu0 %v602
        %643 = vmatmul.bf16.gmra.mxu0 %v612
        %v644 = vpop.f32.mrf.mxu0
        %v645 = vadd.f32 %v584, %v644
        %v646 = vpop.f32.mrf.mxu0
        %v647 = vadd.f32 %v584, %v646
        %648 = vmatmul.bf16.gmra.mxu0 %v615
        %v649 = vpop.f32.mrf.mxu0
        %v650 = vadd.f32 %v584, %v649
        %v651 = vpop.f32.mrf.mxu0
        %v652 = vadd.f32 %v584, %v651
        %653 = vmatmul.bf16.gmra.mxu0 %v618
        %v654 = vpop.f32.mrf.mxu0
        %v655 = vadd.f32 %v584, %v654
        %v656 = vpop.f32.mrf.mxu0
        %v657 = vadd.f32 %v584, %v656
        %658 = vmatmul.bf16.gmra.mxu0 %v621
        %v659 = vpop.f32.mrf.mxu0
        %v660 = vadd.f32 %v584, %v659
        %v661 = vpop.f32.mrf.mxu0
        %v662 = vadd.f32 %v584, %v661
        %663 = vmatmul.bf16.gmra.mxu0 %v624
        %v664 = vpop.f32.mrf.mxu0
        %v665 = vadd.f32 %v584, %v664
        %v666 = vpop.f32.mrf.mxu0
        %v667 = vadd.f32 %v584, %v666
        %668 = vmatmul.bf16.gmra.mxu0 %v627
        %v669 = vpop.f32.mrf.mxu0
        %v670 = vadd.f32 %v584, %v669
        %v671 = vpop.f32.mrf.mxu0
        %v672 = vadd.f32 %v584, %v671
        %673 = vmatmul.bf16.gmra.mxu0 %v630
        %v674 = vpop.f32.mrf.mxu0
        %v675 = vadd.f32 %v584, %v674
        %v676 = vpop.f32.mrf.mxu0
        %v677 = vadd.f32 %v584, %v676
        %678 = vmatmul.bf16.gmra.mxu0 %v633
        %v679 = vpop.f32.mrf.mxu0
        %v680 = vadd.f32 %v584, %v679
        %v681 = vpop.f32.mrf.mxu0
        %v682 = vadd.f32 %v584, %v681
        %683 = vdwg.mxu0
        %v684 = vmax.f32 %v645, 0.0
        %v685 = vmax.f32 %v647, 0.0
        %v686 = vmax.f32 %v650, 0.0
        %v687 = vmax.f32 %v652, 0.0
        %v688 = vmax.f32 %v655, 0.0
        %v689 = vmax.f32 %v657, 0.0
        %v690 = vmax.f32 %v660, 0.0
        %v691 = vmax.f32 %v662, 0.0
        %v692 = vmax.f32 %v665, 0.0
        %v693 = vmax.f32 %v667, 0.0
        %v694 = vmax.f32 %v670, 0.0
        %v695 = vmax.f32 %v672, 0.0
        %v696 = vmax.f32 %v675, 0.0
        %v697 = vmax.f32 %v677, 0.0
        %v698 = vmax.f32 %v680, 0.0
        %v699 = vmax.f32 %v682, 0.0
        %v700 = vpack.c.bf16 %v685, %v684
        %v701 = vpack.c.bf16 %v687, %v686
        %v702 = vpack.c.bf16 %v689, %v688
        %v703 = vpack.c.bf16 %v691, %v690
        %v704 = vpack.c.bf16 %v693, %v692
        %v705 = vpack.c.bf16 %v695, %v694
        %v706 = vpack.c.bf16 %v697, %v696
        %v707 = vpack.c.bf16 %v699, %v698
        %v708 = vld [vmem:[%s5] sm:$0xf]
        %v709 = vld [vmem:[%s5 + $0x4] sm:$0xf]
        %v710 = vld [vmem:[%s5 + $0x8] sm:$0xf]
        %v711 = vld [vmem:[%s5 + $0xc] sm:$0xf]
        %v712 = vld [vmem:[%s5 + $0x10] sm:$0xf]
        %v713 = vld [vmem:[%s5 + $0x14] sm:$0xf]
        %v714 = vld [vmem:[%s5 + $0x18] sm:$0xf]
        %v715 = vld [vmem:[%s5 + $0x1c] sm:$0xf]
        %v716 = vld [vmem:[%s6] sm:$0x1]
        %v718 = vperm.slane %v716, 0
        %v728 = vunpack.c.l.b16 %v708
        %v729 = vunpack.c.l.b16 %v709
        %v730 = vunpack.c.l.b16 %v710
        %v731 = vunpack.c.l.b16 %v711
        %v732 = vunpack.c.l.b16 %v712
        %v733 = vunpack.c.l.b16 %v713
        %v734 = vunpack.c.l.b16 %v714
        %v735 = vunpack.c.l.b16 %v715
        %v736 = vpack.c.b16 %v729, %v728
        %v737 = vpack.c.b16 %v731, %v730
        %v738 = vpack.c.b16 %v733, %v732
        %v739 = vpack.c.b16 %v735, %v734
        %v745 = vsel %vm610, %v700, 0
        %v748 = vsel %vm610, %v701, 0
        %v751 = vsel %vm610, %v702, 0
        %v754 = vsel %vm610, %v703, 0
        %v757 = vsel %vm610, %v704, 0
        %v760 = vsel %vm610, %v705, 0
        %v763 = vsel %vm610, %v706, 0
        %v766 = vsel %vm610, %v707, 0
        %768 = vmatpush.bf16.msra.mxu0 0
        %769 = vmatpush.bf16.msra.mxu0 0
        %770 = vmatpush.bf16.msra.mxu0 0
        %771 = vmatpush.bf16.msra.mxu0 0
        %772 = vmatpush.bf16.msra.mxu0 %v739
        %773 = vmatpush.bf16.msra.mxu0 %v738
        %774 = vmatpush.bf16.msra.mxu0 %v737
        %775 = vmatpush.bf16.msra.mxu0 %v736
        %776 = vmatmul.bf16.gmra.mxu0 %v745
        %v777 = vpop.f32.mrf.mxu0
        %v778 = vadd.f32 %v718, %v777
        %v779 = vpop.f32.mrf.mxu0
        %v780 = vadd.f32 %v718, %v779
        %781 = vmatmul.bf16.gmra.mxu0 %v748
        %v782 = vpop.f32.mrf.mxu0
        %v783 = vadd.f32 %v718, %v782
        %v784 = vpop.f32.mrf.mxu0
        %v785 = vadd.f32 %v718, %v784
        %786 = vmatmul.bf16.gmra.mxu0 %v751
        %v787 = vpop.f32.mrf.mxu0
        %v788 = vadd.f32 %v718, %v787
        %v789 = vpop.f32.mrf.mxu0
        %v790 = vadd.f32 %v718, %v789
        %791 = vmatmul.bf16.gmra.mxu0 %v754
        %v792 = vpop.f32.mrf.mxu0
        %v793 = vadd.f32 %v718, %v792
        %v794 = vpop.f32.mrf.mxu0
        %v795 = vadd.f32 %v718, %v794
        %796 = vmatmul.bf16.gmra.mxu0 %v757
        %v797 = vpop.f32.mrf.mxu0
        %v798 = vadd.f32 %v718, %v797
        %v799 = vpop.f32.mrf.mxu0
        %v800 = vadd.f32 %v718, %v799
        %801 = vmatmul.bf16.gmra.mxu0 %v760
        %v802 = vpop.f32.mrf.mxu0
        %v803 = vadd.f32 %v718, %v802
        %v804 = vpop.f32.mrf.mxu0
        %v805 = vadd.f32 %v718, %v804
        %806 = vmatmul.bf16.gmra.mxu0 %v763
        %v807 = vpop.f32.mrf.mxu0
        %v808 = vadd.f32 %v718, %v807
        %v809 = vpop.f32.mrf.mxu0
        %v810 = vadd.f32 %v718, %v809
        %811 = vmatmul.bf16.gmra.mxu0 %v766
        %v812 = vpop.f32.mrf.mxu0
        %v813 = vadd.f32 %v718, %v812
        %v814 = vpop.f32.mrf.mxu0
        %v815 = vadd.f32 %v718, %v814
        %816 = vdwg.mxu0
        %v817 = vmax.f32 %v778, 0.0
        %v818 = vmax.f32 %v780, 0.0
        %v819 = vmax.f32 %v783, 0.0
        %v820 = vmax.f32 %v785, 0.0
        %v821 = vmax.f32 %v788, 0.0
        %v822 = vmax.f32 %v790, 0.0
        %v823 = vmax.f32 %v793, 0.0
        %v824 = vmax.f32 %v795, 0.0
        %v825 = vmax.f32 %v798, 0.0
        %v826 = vmax.f32 %v800, 0.0
        %v827 = vmax.f32 %v803, 0.0
        %v828 = vmax.f32 %v805, 0.0
        %v829 = vmax.f32 %v808, 0.0
        %v830 = vmax.f32 %v810, 0.0
        %v831 = vmax.f32 %v813, 0.0
        %v832 = vmax.f32 %v815, 0.0
        %v833 = vpack.c.bf16 %v818, %v817
        %v834 = vpack.c.bf16 %v820, %v819
        %v835 = vpack.c.bf16 %v822, %v821
        %v836 = vpack.c.bf16 %v824, %v823
        %v837 = vpack.c.bf16 %v826, %v825
        %v838 = vpack.c.bf16 %v828, %v827
        %v839 = vpack.c.bf16 %v830, %v829
        %v840 = vpack.c.bf16 %v832, %v831
        %v841 = vld [vmem:[%s7] sm:$0xf]
        %v842 = vld [vmem:[%s7 + $0x4] sm:$0xf]
        %v843 = vld [vmem:[%s7 + $0x8] sm:$0xf]
        %v844 = vld [vmem:[%s7 + $0xc] sm:$0xf]
        %v845 = vld [vmem:[%s7 + $0x10] sm:$0xf]
        %v846 = vld [vmem:[%s7 + $0x14] sm:$0xf]
        %v847 = vld [vmem:[%s7 + $0x18] sm:$0xf]
        %v848 = vld [vmem:[%s7 + $0x1c] sm:$0xf]
        %v849 = vld [vmem:[%s8] sm:$0x1]
        %v851 = vperm.slane %v849, 0
        %v861 = vunpack.c.l.b16 %v841
        %v862 = vunpack.c.l.b16 %v842
        %v863 = vunpack.c.l.b16 %v843
        %v864 = vunpack.c.l.b16 %v844
        %v865 = vunpack.c.l.b16 %v845
        %v866 = vunpack.c.l.b16 %v846
        %v867 = vunpack.c.l.b16 %v847
        %v868 = vunpack.c.l.b16 %v848
        %v869 = vpack.c.b16 %v862, %v861
        %v870 = vpack.c.b16 %v864, %v863
        %v871 = vpack.c.b16 %v866, %v865
        %v872 = vpack.c.b16 %v868, %v867
        %v878 = vsel %vm610, %v833, 0
        %v881 = vsel %vm610, %v834, 0
        %v884 = vsel %vm610, %v835, 0
        %v887 = vsel %vm610, %v836, 0
        %v890 = vsel %vm610, %v837, 0
        %v893 = vsel %vm610, %v838, 0
        %v896 = vsel %vm610, %v839, 0
        %v899 = vsel %vm610, %v840, 0
        %901 = vmatpush.bf16.msra.mxu0 0
        %902 = vmatpush.bf16.msra.mxu0 0
        %903 = vmatpush.bf16.msra.mxu0 0
        %904 = vmatpush.bf16.msra.mxu0 0
        %905 = vmatpush.bf16.msra.mxu0 %v872
        %906 = vmatpush.bf16.msra.mxu0 %v871
        %907 = vmatpush.bf16.msra.mxu0 %v870
        %908 = vmatpush.bf16.msra.mxu0 %v869
        %909 = vmatmul.bf16.gmra.mxu0 %v878
        %v910 = vpop.f32.mrf.mxu0
        %v911 = vadd.f32 %v851, %v910
        %v912 = vpop.f32.mrf.mxu0
        %v913 = vadd.f32 %v851, %v912
        %914 = vmatmul.bf16.gmra.mxu0 %v881
        %v915 = vpop.f32.mrf.mxu0
        %v916 = vadd.f32 %v851, %v915
        %v917 = vpop.f32.mrf.mxu0
        %v918 = vadd.f32 %v851, %v917
        %919 = vmatmul.bf16.gmra.mxu0 %v884
        %v920 = vpop.f32.mrf.mxu0
        %v921 = vadd.f32 %v851, %v920
        %v922 = vpop.f32.mrf.mxu0
        %v923 = vadd.f32 %v851, %v922
        %924 = vmatmul.bf16.gmra.mxu0 %v887
        %v925 = vpop.f32.mrf.mxu0
        %v926 = vadd.f32 %v851, %v925
        %v927 = vpop.f32.mrf.mxu0
        %v928 = vadd.f32 %v851, %v927
        %929 = vmatmul.bf16.gmra.mxu0 %v890
        %v930 = vpop.f32.mrf.mxu0
        %v931 = vadd.f32 %v851, %v930
        %v932 = vpop.f32.mrf.mxu0
        %v933 = vadd.f32 %v851, %v932
        %934 = vmatmul.bf16.gmra.mxu0 %v893
        %v935 = vpop.f32.mrf.mxu0
        %v936 = vadd.f32 %v851, %v935
        %v937 = vpop.f32.mrf.mxu0
        %v938 = vadd.f32 %v851, %v937
        %939 = vmatmul.bf16.gmra.mxu0 %v896
        %v940 = vpop.f32.mrf.mxu0
        %v941 = vadd.f32 %v851, %v940
        %v942 = vpop.f32.mrf.mxu0
        %v943 = vadd.f32 %v851, %v942
        %944 = vmatmul.bf16.gmra.mxu0 %v899
        %v945 = vpop.f32.mrf.mxu0
        %v946 = vadd.f32 %v851, %v945
        %v947 = vpop.f32.mrf.mxu0
        %v948 = vadd.f32 %v851, %v947
        %949 = vdwg.mxu0
        %v950 = vmax.f32 %v911, 0.0
        %v951 = vmax.f32 %v913, 0.0
        %v952 = vmax.f32 %v916, 0.0
        %v953 = vmax.f32 %v918, 0.0
        %v954 = vmax.f32 %v921, 0.0
        %v955 = vmax.f32 %v923, 0.0
        %v956 = vmax.f32 %v926, 0.0
        %v957 = vmax.f32 %v928, 0.0
        %v958 = vmax.f32 %v931, 0.0
        %v959 = vmax.f32 %v933, 0.0
        %v960 = vmax.f32 %v936, 0.0
        %v961 = vmax.f32 %v938, 0.0
        %v962 = vmax.f32 %v941, 0.0
        %v963 = vmax.f32 %v943, 0.0
        %v964 = vmax.f32 %v946, 0.0
        %v965 = vmax.f32 %v948, 0.0
        %v966 = vpack.c.bf16 %v951, %v950
        %v967 = vpack.c.bf16 %v953, %v952
        %v968 = vpack.c.bf16 %v955, %v954
        %v969 = vpack.c.bf16 %v957, %v956
        %v970 = vpack.c.bf16 %v959, %v958
        %v971 = vpack.c.bf16 %v961, %v960
        %v972 = vpack.c.bf16 %v963, %v962
        %v973 = vpack.c.bf16 %v965, %v964
        %v974 = vld [vmem:[%s9] sm:$0xff]
        %v975 = vld [vmem:[%s9 + $0x8] sm:$0xff]
        %v976 = vld [vmem:[%s9 + $0x10] sm:$0xff]
        %v977 = vld [vmem:[%s9 + $0x18] sm:$0xff]
        %v978 = vld [vmem:[%s9 + $0x20] sm:$0xff]
        %v979 = vld [vmem:[%s9 + $0x28] sm:$0xff]
        %v980 = vld [vmem:[%s9 + $0x30] sm:$0xff]
        %v981 = vld [vmem:[%s9 + $0x38] sm:$0xff]
        %v982 = vld [vmem:[%s9 + $0x40] sm:$0xff]
        %v983 = vld [vmem:[%s9 + $0x48] sm:$0xff]
        %v984 = vld [vmem:[%s9 + $0x50] sm:$0xff]
        %v985 = vld [vmem:[%s9 + $0x58] sm:$0xff]
        %v986 = vld [vmem:[%s9 + $0x60] sm:$0xff]
        %v987 = vld [vmem:[%s9 + $0x68] sm:$0xff]
        %v988 = vld [vmem:[%s9 + $0x70] sm:$0xff]
        %v989 = vld [vmem:[%s9 + $0x78] sm:$0xff]
        %v990 = vld [vmem:[%s9 + $0x80] sm:$0xff]
        %v991 = vld [vmem:[%s9 + $0x88] sm:$0xff]
        %v992 = vld [vmem:[%s9 + $0x90] sm:$0xff]
        %v993 = vld [vmem:[%s9 + $0x98] sm:$0xff]
        %v994 = vld [vmem:[%s9 + $0xa0] sm:$0xff]
        %v995 = vld [vmem:[%s9 + $0xa8] sm:$0xff]
        %v996 = vld [vmem:[%s9 + $0xb0] sm:$0xff]
        %v997 = vld [vmem:[%s9 + $0xb8] sm:$0xff]
        %v998 = vld [vmem:[%s9 + $0xc0] sm:$0xff]
        %v999 = vld [vmem:[%s9 + $0xc8] sm:$0xff]
        %v1000 = vld [vmem:[%s9 + $0xd0] sm:$0xff]
        %v1001 = vld [vmem:[%s9 + $0xd8] sm:$0xff]
        %v1002 = vld [vmem:[%s9 + $0xe0] sm:$0xff]
        %v1003 = vld [vmem:[%s9 + $0xe8] sm:$0xff]
        %v1004 = vld [vmem:[%s9 + $0xf0] sm:$0xff]
        %v1005 = vld [vmem:[%s9 + $0xf8] sm:$0xff]
        %v1006 = vld [vmem:[%s9 + $0x100] sm:$0xff]
        %v1007 = vld [vmem:[%s9 + $0x108] sm:$0xff]
        %v1008 = vld [vmem:[%s9 + $0x110] sm:$0xff]
        %v1009 = vld [vmem:[%s9 + $0x118] sm:$0xff]
        %v1010 = vld [vmem:[%s9 + $0x120] sm:$0xff]
        %v1011 = vld [vmem:[%s9 + $0x128] sm:$0xff]
        %v1012 = vld [vmem:[%s9 + $0x130] sm:$0xff]
        %v1013 = vld [vmem:[%s9 + $0x138] sm:$0xff]
        %v1014 = vld [vmem:[%s9 + $0x140] sm:$0xff]
        %v1015 = vld [vmem:[%s9 + $0x148] sm:$0xff]
        %v1016 = vld [vmem:[%s9 + $0x150] sm:$0xff]
        %v1017 = vld [vmem:[%s9 + $0x158] sm:$0xff]
        %v1018 = vld [vmem:[%s9 + $0x160] sm:$0xff]
        %v1019 = vld [vmem:[%s9 + $0x168] sm:$0xff]
        %v1020 = vld [vmem:[%s9 + $0x170] sm:$0xff]
        %v1021 = vld [vmem:[%s9 + $0x178] sm:$0xff]
        %v1022 = vld [vmem:[%s9 + $0x180] sm:$0xff]
        %v1023 = vld [vmem:[%s9 + $0x188] sm:$0xff]
        %v1024 = vld [vmem:[%s9 + $0x190] sm:$0xff]
        %v1025 = vld [vmem:[%s9 + $0x198] sm:$0xff]
        %v1026 = vld [vmem:[%s9 + $0x1a0] sm:$0xff]
        %v1027 = vld [vmem:[%s9 + $0x1a8] sm:$0xff]
        %v1028 = vld [vmem:[%s9 + $0x1b0] sm:$0xff]
        %v1029 = vld [vmem:[%s9 + $0x1b8] sm:$0xff]
        %v1030 = vld [vmem:[%s9 + $0x1c0] sm:$0xff]
        %v1031 = vld [vmem:[%s9 + $0x1c8] sm:$0xff]
        %v1032 = vld [vmem:[%s9 + $0x1d0] sm:$0xff]
        %v1033 = vld [vmem:[%s9 + $0x1d8] sm:$0xff]
        %v1034 = vld [vmem:[%s9 + $0x1e0] sm:$0xff]
        %v1035 = vld [vmem:[%s9 + $0x1e8] sm:$0xff]
        %v1036 = vld [vmem:[%s9 + $0x1f0] sm:$0xff]
        %v1037 = vld [vmem:[%s9 + $0x1f8] sm:$0xff]
        %v1102 = vunpack.c.l.b16 %v974
        %v1103 = vunpack.c.h.b16 %v974
        %v1104 = vunpack.c.l.b16 %v975
        %v1105 = vunpack.c.h.b16 %v975
        %v1106 = vunpack.c.l.b16 %v976
        %v1107 = vunpack.c.h.b16 %v976
        %v1108 = vunpack.c.l.b16 %v977
        %v1109 = vunpack.c.h.b16 %v977
        %v1110 = vunpack.c.l.b16 %v978
        %v1111 = vunpack.c.h.b16 %v978
        %v1112 = vunpack.c.l.b16 %v979
        %v1113 = vunpack.c.h.b16 %v979
        %v1114 = vunpack.c.l.b16 %v980
        %v1115 = vunpack.c.h.b16 %v980
        %v1116 = vunpack.c.l.b16 %v981
        %v1117 = vunpack.c.h.b16 %v981
        %v1118 = vunpack.c.l.b16 %v982
        %v1119 = vunpack.c.h.b16 %v982
        %v1120 = vunpack.c.l.b16 %v983
        %v1121 = vunpack.c.h.b16 %v983
        %v1122 = vunpack.c.l.b16 %v984
        %v1123 = vunpack.c.h.b16 %v984
        %v1124 = vunpack.c.l.b16 %v985
        %v1125 = vunpack.c.h.b16 %v985
        %v1126 = vunpack.c.l.b16 %v986
        %v1127 = vunpack.c.h.b16 %v986
        %v1128 = vunpack.c.l.b16 %v987
        %v1129 = vunpack.c.h.b16 %v987
        %v1130 = vunpack.c.l.b16 %v988
        %v1131 = vunpack.c.h.b16 %v988
        %v1132 = vunpack.c.l.b16 %v989
        %v1133 = vunpack.c.h.b16 %v989
        %v1134 = vunpack.c.l.b16 %v990
        %v1135 = vunpack.c.h.b16 %v990
        %v1136 = vunpack.c.l.b16 %v991
        %v1137 = vunpack.c.h.b16 %v991
        %v1138 = vunpack.c.l.b16 %v992
        %v1139 = vunpack.c.h.b16 %v992
        %v1140 = vunpack.c.l.b16 %v993
        %v1141 = vunpack.c.h.b16 %v993
        %v1142 = vunpack.c.l.b16 %v994
        %v1143 = vunpack.c.h.b16 %v994
        %v1144 = vunpack.c.l.b16 %v995
        %v1145 = vunpack.c.h.b16 %v995
        %v1146 = vunpack.c.l.b16 %v996
        %v1147 = vunpack.c.h.b16 %v996
        %v1148 = vunpack.c.l.b16 %v997
        %v1149 = vunpack.c.h.b16 %v997
        %v1150 = vunpack.c.l.b16 %v998
        %v1151 = vunpack.c.h.b16 %v998
        %v1152 = vunpack.c.l.b16 %v999
        %v1153 = vunpack.c.h.b16 %v999
        %v1154 = vunpack.c.l.b16 %v1000
        %v1155 = vunpack.c.h.b16 %v1000
        %v1156 = vunpack.c.l.b16 %v1001
        %v1157 = vunpack.c.h.b16 %v1001
        %v1158 = vunpack.c.l.b16 %v1002
        %v1159 = vunpack.c.h.b16 %v1002
        %v1160 = vunpack.c.l.b16 %v1003
        %v1161 = vunpack.c.h.b16 %v1003
        %v1162 = vunpack.c.l.b16 %v1004
        %v1163 = vunpack.c.h.b16 %v1004
        %v1164 = vunpack.c.l.b16 %v1005
        %v1165 = vunpack.c.h.b16 %v1005
        %v1166 = vunpack.c.l.b16 %v1006
        %v1167 = vunpack.c.h.b16 %v1006
        %v1168 = vunpack.c.l.b16 %v1007
        %v1169 = vunpack.c.h.b16 %v1007
        %v1170 = vunpack.c.l.b16 %v1008
        %v1171 = vunpack.c.h.b16 %v1008
        %v1172 = vunpack.c.l.b16 %v1009
        %v1173 = vunpack.c.h.b16 %v1009
        %v1174 = vunpack.c.l.b16 %v1010
        %v1175 = vunpack.c.h.b16 %v1010
        %v1176 = vunpack.c.l.b16 %v1011
        %v1177 = vunpack.c.h.b16 %v1011
        %v1178 = vunpack.c.l.b16 %v1012
        %v1179 = vunpack.c.h.b16 %v1012
        %v1180 = vunpack.c.l.b16 %v1013
        %v1181 = vunpack.c.h.b16 %v1013
        %v1182 = vunpack.c.l.b16 %v1014
        %v1183 = vunpack.c.h.b16 %v1014
        %v1184 = vunpack.c.l.b16 %v1015
        %v1185 = vunpack.c.h.b16 %v1015
        %v1186 = vunpack.c.l.b16 %v1016
        %v1187 = vunpack.c.h.b16 %v1016
        %v1188 = vunpack.c.l.b16 %v1017
        %v1189 = vunpack.c.h.b16 %v1017
        %v1190 = vunpack.c.l.b16 %v1018
        %v1191 = vunpack.c.h.b16 %v1018
        %v1192 = vunpack.c.l.b16 %v1019
        %v1193 = vunpack.c.h.b16 %v1019
        %v1194 = vunpack.c.l.b16 %v1020
        %v1195 = vunpack.c.h.b16 %v1020
        %v1196 = vunpack.c.l.b16 %v1021
        %v1197 = vunpack.c.h.b16 %v1021
        %v1198 = vunpack.c.l.b16 %v1022
        %v1199 = vunpack.c.h.b16 %v1022
        %v1200 = vunpack.c.l.b16 %v1023
        %v1201 = vunpack.c.h.b16 %v1023
        %v1202 = vunpack.c.l.b16 %v1024
        %v1203 = vunpack.c.h.b16 %v1024
        %v1204 = vunpack.c.l.b16 %v1025
        %v1205 = vunpack.c.h.b16 %v1025
        %v1206 = vunpack.c.l.b16 %v1026
        %v1207 = vunpack.c.h.b16 %v1026
        %v1208 = vunpack.c.l.b16 %v1027
        %v1209 = vunpack.c.h.b16 %v1027
        %v1210 = vunpack.c.l.b16 %v1028
        %v1211 = vunpack.c.h.b16 %v1028
        %v1212 = vunpack.c.l.b16 %v1029
        %v1213 = vunpack.c.h.b16 %v1029
        %v1214 = vunpack.c.l.b16 %v1030
        %v1215 = vunpack.c.h.b16 %v1030
        %v1216 = vunpack.c.l.b16 %v1031
        %v1217 = vunpack.c.h.b16 %v1031
        %v1218 = vunpack.c.l.b16 %v1032
        %v1219 = vunpack.c.h.b16 %v1032
        %v1220 = vunpack.c.l.b16 %v1033
        %v1221 = vunpack.c.h.b16 %v1033
        %v1222 = vunpack.c.l.b16 %v1034
        %v1223 = vunpack.c.h.b16 %v1034
        %v1224 = vunpack.c.l.b16 %v1035
        %v1225 = vunpack.c.h.b16 %v1035
        %v1226 = vunpack.c.l.b16 %v1036
        %v1227 = vunpack.c.h.b16 %v1036
        %v1228 = vunpack.c.l.b16 %v1037
        %v1229 = vunpack.c.h.b16 %v1037
        %v1230 = vpack.c.b16 %v1110, %v1102
        %v1231 = vpack.c.b16 %v1111, %v1103
        %v1232 = vpack.c.b16 %v1112, %v1104
        %v1233 = vpack.c.b16 %v1113, %v1105
        %v1234 = vpack.c.b16 %v1114, %v1106
        %v1235 = vpack.c.b16 %v1115, %v1107
        %v1236 = vpack.c.b16 %v1116, %v1108
        %v1237 = vpack.c.b16 %v1117, %v1109
        %v1238 = vpack.c.b16 %v1126, %v1118
        %v1239 = vpack.c.b16 %v1127, %v1119
        %v1240 = vpack.c.b16 %v1128, %v1120
        %v1241 = vpack.c.b16 %v1129, %v1121
        %v1242 = vpack.c.b16 %v1130, %v1122
        %v1243 = vpack.c.b16 %v1131, %v1123
        %v1244 = vpack.c.b16 %v1132, %v1124
        %v1245 = vpack.c.b16 %v1133, %v1125
        %v1246 = vpack.c.b16 %v1142, %v1134
        %v1247 = vpack.c.b16 %v1143, %v1135
        %v1248 = vpack.c.b16 %v1144, %v1136
        %v1249 = vpack.c.b16 %v1145, %v1137
        %v1250 = vpack.c.b16 %v1146, %v1138
        %v1251 = vpack.c.b16 %v1147, %v1139
        %v1252 = vpack.c.b16 %v1148, %v1140
        %v1253 = vpack.c.b16 %v1149, %v1141
        %v1254 = vpack.c.b16 %v1158, %v1150
        %v1255 = vpack.c.b16 %v1159, %v1151
        %v1256 = vpack.c.b16 %v1160, %v1152
        %v1257 = vpack.c.b16 %v1161, %v1153
        %v1258 = vpack.c.b16 %v1162, %v1154
        %v1259 = vpack.c.b16 %v1163, %v1155
        %v1260 = vpack.c.b16 %v1164, %v1156
        %v1261 = vpack.c.b16 %v1165, %v1157
        %v1262 = vpack.c.b16 %v1174, %v1166
        %v1263 = vpack.c.b16 %v1175, %v1167
        %v1264 = vpack.c.b16 %v1176, %v1168
        %v1265 = vpack.c.b16 %v1177, %v1169
        %v1266 = vpack.c.b16 %v1178, %v1170
        %v1267 = vpack.c.b16 %v1179, %v1171
        %v1268 = vpack.c.b16 %v1180, %v1172
        %v1269 = vpack.c.b16 %v1181, %v1173
        %v1270 = vpack.c.b16 %v1190, %v1182
        %v1271 = vpack.c.b16 %v1191, %v1183
        %v1272 = vpack.c.b16 %v1192, %v1184
        %v1273 = vpack.c.b16 %v1193, %v1185
        %v1274 = vpack.c.b16 %v1194, %v1186
        %v1275 = vpack.c.b16 %v1195, %v1187
        %v1276 = vpack.c.b16 %v1196, %v1188
        %v1277 = vpack.c.b16 %v1197, %v1189
        %v1278 = vpack.c.b16 %v1206, %v1198
        %v1279 = vpack.c.b16 %v1207, %v1199
        %v1280 = vpack.c.b16 %v1208, %v1200
        %v1281 = vpack.c.b16 %v1209, %v1201
        %v1282 = vpack.c.b16 %v1210, %v1202
        %v1283 = vpack.c.b16 %v1211, %v1203
        %v1284 = vpack.c.b16 %v1212, %v1204
        %v1285 = vpack.c.b16 %v1213, %v1205
        %v1286 = vpack.c.b16 %v1222, %v1214
        %v1287 = vpack.c.b16 %v1223, %v1215
        %v1288 = vpack.c.b16 %v1224, %v1216
        %v1289 = vpack.c.b16 %v1225, %v1217
        %v1290 = vpack.c.b16 %v1226, %v1218
        %v1291 = vpack.c.b16 %v1227, %v1219
        %v1292 = vpack.c.b16 %v1228, %v1220
        %v1293 = vpack.c.b16 %v1229, %v1221
        %1358 = vmatpush.bf16.msra.mxu0 %v1286
        %1359 = vmatpush.bf16.msra.mxu0 %v1278
        %1360 = vmatpush.bf16.msra.mxu0 %v1270
        %1361 = vmatpush.bf16.msra.mxu0 %v1262
        %1362 = vmatpush.bf16.msra.mxu0 %v1254
        %1363 = vmatpush.bf16.msra.mxu0 %v1246
        %1364 = vmatpush.bf16.msra.mxu0 %v1238
        %1365 = vmatpush.bf16.msra.mxu0 %v1230
        %1366 = vmatmul.bf16.gmra.mxu0 %v966
        %v1367 = vpop.f32.mrf.mxu0
        %v1368 = vadd.f32 0.0, %v1367
        %v1369 = vpop.f32.mrf.mxu0
        %v1370 = vadd.f32 0.0, %v1369
        %1371 = vmatmul.bf16.gmra.mxu0 %v967
        %v1372 = vpop.f32.mrf.mxu0
        %v1373 = vadd.f32 0.0, %v1372
        %v1374 = vpop.f32.mrf.mxu0
        %v1375 = vadd.f32 0.0, %v1374
        %1376 = vmatmul.bf16.gmra.mxu0 %v968
        %v1377 = vpop.f32.mrf.mxu0
        %v1378 = vadd.f32 0.0, %v1377
        %v1379 = vpop.f32.mrf.mxu0
        %v1380 = vadd.f32 0.0, %v1379
        %1381 = vmatmul.bf16.gmra.mxu0 %v969
        %v1382 = vpop.f32.mrf.mxu0
        %v1383 = vadd.f32 0.0, %v1382
        %v1384 = vpop.f32.mrf.mxu0
        %v1385 = vadd.f32 0.0, %v1384
        %1386 = vmatmul.bf16.gmra.mxu0 %v970
        %v1387 = vpop.f32.mrf.mxu0
        %v1388 = vadd.f32 0.0, %v1387
        %v1389 = vpop.f32.mrf.mxu0
        %v1390 = vadd.f32 0.0, %v1389
        %1391 = vmatmul.bf16.gmra.mxu0 %v971
        %v1392 = vpop.f32.mrf.mxu0
        %v1393 = vadd.f32 0.0, %v1392
        %v1394 = vpop.f32.mrf.mxu0
        %v1395 = vadd.f32 0.0, %v1394
        %1396 = vmatmul.bf16.gmra.mxu0 %v972
        %v1397 = vpop.f32.mrf.mxu0
        %v1398 = vadd.f32 0.0, %v1397
        %v1399 = vpop.f32.mrf.mxu0
        %v1400 = vadd.f32 0.0, %v1399
        %1401 = vmatmul.bf16.gmra.mxu0 %v973
        %v1402 = vpop.f32.mrf.mxu0
        %v1403 = vadd.f32 0.0, %v1402
        %v1404 = vpop.f32.mrf.mxu0
        %v1405 = vadd.f32 0.0, %v1404
        %1406 = vdwg.mxu0
        %1407 = vmatpush.bf16.msra.mxu0 %v1287
        %1408 = vmatpush.bf16.msra.mxu0 %v1279
        %1409 = vmatpush.bf16.msra.mxu0 %v1271
        %1410 = vmatpush.bf16.msra.mxu0 %v1263
        %1411 = vmatpush.bf16.msra.mxu0 %v1255
        %1412 = vmatpush.bf16.msra.mxu0 %v1247
        %1413 = vmatpush.bf16.msra.mxu0 %v1239
        %1414 = vmatpush.bf16.msra.mxu0 %v1231
        %1415 = vmatmul.bf16.gmra.mxu0 %v966
        %v1416 = vpop.f32.mrf.mxu0
        %v1417 = vadd.f32 0.0, %v1416
        %v1418 = vpop.f32.mrf.mxu0
        %v1419 = vadd.f32 0.0, %v1418
        %1420 = vmatmul.bf16.gmra.mxu0 %v967
        %v1421 = vpop.f32.mrf.mxu0
        %v1422 = vadd.f32 0.0, %v1421
        %v1423 = vpop.f32.mrf.mxu0
        %v1424 = vadd.f32 0.0, %v1423
        %1425 = vmatmul.bf16.gmra.mxu0 %v968
        %v1426 = vpop.f32.mrf.mxu0
        %v1427 = vadd.f32 0.0, %v1426
        %v1428 = vpop.f32.mrf.mxu0
        %v1429 = vadd.f32 0.0, %v1428
        %1430 = vmatmul.bf16.gmra.mxu0 %v969
        %v1431 = vpop.f32.mrf.mxu0
        %v1432 = vadd.f32 0.0, %v1431
        %v1433 = vpop.f32.mrf.mxu0
        %v1434 = vadd.f32 0.0, %v1433
        %1435 = vmatmul.bf16.gmra.mxu0 %v970
        %v1436 = vpop.f32.mrf.mxu0
        %v1437 = vadd.f32 0.0, %v1436
        %v1438 = vpop.f32.mrf.mxu0
        %v1439 = vadd.f32 0.0, %v1438
        %1440 = vmatmul.bf16.gmra.mxu0 %v971
        %v1441 = vpop.f32.mrf.mxu0
        %v1442 = vadd.f32 0.0, %v1441
        %v1443 = vpop.f32.mrf.mxu0
        %v1444 = vadd.f32 0.0, %v1443
        %1445 = vmatmul.bf16.gmra.mxu0 %v972
        %v1446 = vpop.f32.mrf.mxu0
        %v1447 = vadd.f32 0.0, %v1446
        %v1448 = vpop.f32.mrf.mxu0
        %v1449 = vadd.f32 0.0, %v1448
        %1450 = vmatmul.bf16.gmra.mxu0 %v973
        %v1451 = vpop.f32.mrf.mxu0
        %v1452 = vadd.f32 0.0, %v1451
        %v1453 = vpop.f32.mrf.mxu0
        %v1454 = vadd.f32 0.0, %v1453
        %1455 = vdwg.mxu0
        %1456 = vmatpush.bf16.msra.mxu0 %v1288
        %1457 = vmatpush.bf16.msra.mxu0 %v1280
        %1458 = vmatpush.bf16.msra.mxu0 %v1272
        %1459 = vmatpush.bf16.msra.mxu0 %v1264
        %1460 = vmatpush.bf16.msra.mxu0 %v1256
        %1461 = vmatpush.bf16.msra.mxu0 %v1248
        %1462 = vmatpush.bf16.msra.mxu0 %v1240
        %1463 = vmatpush.bf16.msra.mxu0 %v1232
        %1464 = vmatmul.bf16.gmra.mxu0 %v966
        %v1465 = vpop.f32.mrf.mxu0
        %v1466 = vadd.f32 0.0, %v1465
        %v1467 = vpop.f32.mrf.mxu0
        %v1468 = vadd.f32 0.0, %v1467
        %1469 = vmatmul.bf16.gmra.mxu0 %v967
        %v1470 = vpop.f32.mrf.mxu0
        %v1471 = vadd.f32 0.0, %v1470
        %v1472 = vpop.f32.mrf.mxu0
        %v1473 = vadd.f32 0.0, %v1472
        %1474 = vmatmul.bf16.gmra.mxu0 %v968
        %v1475 = vpop.f32.mrf.mxu0
        %v1476 = vadd.f32 0.0, %v1475
        %v1477 = vpop.f32.mrf.mxu0
        %v1478 = vadd.f32 0.0, %v1477
        %1479 = vmatmul.bf16.gmra.mxu0 %v969
        %v1480 = vpop.f32.mrf.mxu0
        %v1481 = vadd.f32 0.0, %v1480
        %v1482 = vpop.f32.mrf.mxu0
        %v1483 = vadd.f32 0.0, %v1482
        %1484 = vmatmul.bf16.gmra.mxu0 %v970
        %v1485 = vpop.f32.mrf.mxu0
        %v1486 = vadd.f32 0.0, %v1485
        %v1487 = vpop.f32.mrf.mxu0
        %v1488 = vadd.f32 0.0, %v1487
        %1489 = vmatmul.bf16.gmra.mxu0 %v971
        %v1490 = vpop.f32.mrf.mxu0
        %v1491 = vadd.f32 0.0, %v1490
        %v1492 = vpop.f32.mrf.mxu0
        %v1493 = vadd.f32 0.0, %v1492
        %1494 = vmatmul.bf16.gmra.mxu0 %v972
        %v1495 = vpop.f32.mrf.mxu0
        %v1496 = vadd.f32 0.0, %v1495
        %v1497 = vpop.f32.mrf.mxu0
        %v1498 = vadd.f32 0.0, %v1497
        %1499 = vmatmul.bf16.gmra.mxu0 %v973
        %v1500 = vpop.f32.mrf.mxu0
        %v1501 = vadd.f32 0.0, %v1500
        %v1502 = vpop.f32.mrf.mxu0
        %v1503 = vadd.f32 0.0, %v1502
        %1504 = vdwg.mxu0
        %1505 = vmatpush.bf16.msra.mxu0 %v1289
        %1506 = vmatpush.bf16.msra.mxu0 %v1281
        %1507 = vmatpush.bf16.msra.mxu0 %v1273
        %1508 = vmatpush.bf16.msra.mxu0 %v1265
        %1509 = vmatpush.bf16.msra.mxu0 %v1257
        %1510 = vmatpush.bf16.msra.mxu0 %v1249
        %1511 = vmatpush.bf16.msra.mxu0 %v1241
        %1512 = vmatpush.bf16.msra.mxu0 %v1233
        %1513 = vmatmul.bf16.gmra.mxu0 %v966
        %v1514 = vpop.f32.mrf.mxu0
        %v1515 = vadd.f32 0.0, %v1514
        %v1516 = vpop.f32.mrf.mxu0
        %v1517 = vadd.f32 0.0, %v1516
        %1518 = vmatmul.bf16.gmra.mxu0 %v967
        %v1519 = vpop.f32.mrf.mxu0
        %v1520 = vadd.f32 0.0, %v1519
        %v1521 = vpop.f32.mrf.mxu0
        %v1522 = vadd.f32 0.0, %v1521
        %1523 = vmatmul.bf16.gmra.mxu0 %v968
        %v1524 = vpop.f32.mrf.mxu0
        %v1525 = vadd.f32 0.0, %v1524
        %v1526 = vpop.f32.mrf.mxu0
        %v1527 = vadd.f32 0.0, %v1526
        %1528 = vmatmul.bf16.gmra.mxu0 %v969
        %v1529 = vpop.f32.mrf.mxu0
        %v1530 = vadd.f32 0.0, %v1529
        %v1531 = vpop.f32.mrf.mxu0
        %v1532 = vadd.f32 0.0, %v1531
        %1533 = vmatmul.bf16.gmra.mxu0 %v970
        %v1534 = vpop.f32.mrf.mxu0
        %v1535 = vadd.f32 0.0, %v1534
        %v1536 = vpop.f32.mrf.mxu0
        %v1537 = vadd.f32 0.0, %v1536
        %1538 = vmatmul.bf16.gmra.mxu0 %v971
        %v1539 = vpop.f32.mrf.mxu0
        %v1540 = vadd.f32 0.0, %v1539
        %v1541 = vpop.f32.mrf.mxu0
        %v1542 = vadd.f32 0.0, %v1541
        %1543 = vmatmul.bf16.gmra.mxu0 %v972
        %v1544 = vpop.f32.mrf.mxu0
        %v1545 = vadd.f32 0.0, %v1544
        %v1546 = vpop.f32.mrf.mxu0
        %v1547 = vadd.f32 0.0, %v1546
        %1548 = vmatmul.bf16.gmra.mxu0 %v973
        %v1549 = vpop.f32.mrf.mxu0
        %v1550 = vadd.f32 0.0, %v1549
        %v1551 = vpop.f32.mrf.mxu0
        %v1552 = vadd.f32 0.0, %v1551
        %1553 = vdwg.mxu0
        %1554 = vmatpush.bf16.msra.mxu0 %v1290
        %1555 = vmatpush.bf16.msra.mxu0 %v1282
        %1556 = vmatpush.bf16.msra.mxu0 %v1274
        %1557 = vmatpush.bf16.msra.mxu0 %v1266
        %1558 = vmatpush.bf16.msra.mxu0 %v1258
        %1559 = vmatpush.bf16.msra.mxu0 %v1250
        %1560 = vmatpush.bf16.msra.mxu0 %v1242
        %1561 = vmatpush.bf16.msra.mxu0 %v1234
        %1562 = vmatmul.bf16.gmra.mxu0 %v966
        %v1563 = vpop.f32.mrf.mxu0
        %v1564 = vadd.f32 0.0, %v1563
        %v1565 = vpop.f32.mrf.mxu0
        %v1566 = vadd.f32 0.0, %v1565
        %1567 = vmatmul.bf16.gmra.mxu0 %v967
        %v1568 = vpop.f32.mrf.mxu0
        %v1569 = vadd.f32 0.0, %v1568
        %v1570 = vpop.f32.mrf.mxu0
        %v1571 = vadd.f32 0.0, %v1570
        %1572 = vmatmul.bf16.gmra.mxu0 %v968
        %v1573 = vpop.f32.mrf.mxu0
        %v1574 = vadd.f32 0.0, %v1573
        %v1575 = vpop.f32.mrf.mxu0
        %v1576 = vadd.f32 0.0, %v1575
        %1577 = vmatmul.bf16.gmra.mxu0 %v969
        %v1578 = vpop.f32.mrf.mxu0
        %v1579 = vadd.f32 0.0, %v1578
        %v1580 = vpop.f32.mrf.mxu0
        %v1581 = vadd.f32 0.0, %v1580
        %1582 = vmatmul.bf16.gmra.mxu0 %v970
        %v1583 = vpop.f32.mrf.mxu0
        %v1584 = vadd.f32 0.0, %v1583
        %v1585 = vpop.f32.mrf.mxu0
        %v1586 = vadd.f32 0.0, %v1585
        %1587 = vmatmul.bf16.gmra.mxu0 %v971
        %v1588 = vpop.f32.mrf.mxu0
        %v1589 = vadd.f32 0.0, %v1588
        %v1590 = vpop.f32.mrf.mxu0
        %v1591 = vadd.f32 0.0, %v1590
        %1592 = vmatmul.bf16.gmra.mxu0 %v972
        %v1593 = vpop.f32.mrf.mxu0
        %v1594 = vadd.f32 0.0, %v1593
        %v1595 = vpop.f32.mrf.mxu0
        %v1596 = vadd.f32 0.0, %v1595
        %1597 = vmatmul.bf16.gmra.mxu0 %v973
        %v1598 = vpop.f32.mrf.mxu0
        %v1599 = vadd.f32 0.0, %v1598
        %v1600 = vpop.f32.mrf.mxu0
        %v1601 = vadd.f32 0.0, %v1600
        %1602 = vdwg.mxu0
        %1603 = vmatpush.bf16.msra.mxu0 %v1291
        %1604 = vmatpush.bf16.msra.mxu0 %v1283
        %1605 = vmatpush.bf16.msra.mxu0 %v1275
        %1606 = vmatpush.bf16.msra.mxu0 %v1267
        %1607 = vmatpush.bf16.msra.mxu0 %v1259
        %1608 = vmatpush.bf16.msra.mxu0 %v1251
        %1609 = vmatpush.bf16.msra.mxu0 %v1243
        %1610 = vmatpush.bf16.msra.mxu0 %v1235
        %1611 = vmatmul.bf16.gmra.mxu0 %v966
        %v1612 = vpop.f32.mrf.mxu0
        %v1613 = vadd.f32 0.0, %v1612
        %v1614 = vpop.f32.mrf.mxu0
        %v1615 = vadd.f32 0.0, %v1614
        %1616 = vmatmul.bf16.gmra.mxu0 %v967
        %v1617 = vpop.f32.mrf.mxu0
        %v1618 = vadd.f32 0.0, %v1617
        %v1619 = vpop.f32.mrf.mxu0
        %v1620 = vadd.f32 0.0, %v1619
        %1621 = vmatmul.bf16.gmra.mxu0 %v968
        %v1622 = vpop.f32.mrf.mxu0
        %v1623 = vadd.f32 0.0, %v1622
        %v1624 = vpop.f32.mrf.mxu0
        %v1625 = vadd.f32 0.0, %v1624
        %1626 = vmatmul.bf16.gmra.mxu0 %v969
        %v1627 = vpop.f32.mrf.mxu0
        %v1628 = vadd.f32 0.0, %v1627
        %v1629 = vpop.f32.mrf.mxu0
        %v1630 = vadd.f32 0.0, %v1629
        %1631 = vmatmul.bf16.gmra.mxu0 %v970
        %v1632 = vpop.f32.mrf.mxu0
        %v1633 = vadd.f32 0.0, %v1632
        %v1634 = vpop.f32.mrf.mxu0
        %v1635 = vadd.f32 0.0, %v1634
        %1636 = vmatmul.bf16.gmra.mxu0 %v971
        %v1637 = vpop.f32.mrf.mxu0
        %v1638 = vadd.f32 0.0, %v1637
        %v1639 = vpop.f32.mrf.mxu0
        %v1640 = vadd.f32 0.0, %v1639
        %1641 = vmatmul.bf16.gmra.mxu0 %v972
        %v1642 = vpop.f32.mrf.mxu0
        %v1643 = vadd.f32 0.0, %v1642
        %v1644 = vpop.f32.mrf.mxu0
        %v1645 = vadd.f32 0.0, %v1644
        %1646 = vmatmul.bf16.gmra.mxu0 %v973
        %v1647 = vpop.f32.mrf.mxu0
        %v1648 = vadd.f32 0.0, %v1647
        %v1649 = vpop.f32.mrf.mxu0
        %v1650 = vadd.f32 0.0, %v1649
        %1651 = vdwg.mxu0
        %1652 = vmatpush.bf16.msra.mxu0 %v1292
        %1653 = vmatpush.bf16.msra.mxu0 %v1284
        %1654 = vmatpush.bf16.msra.mxu0 %v1276
        %1655 = vmatpush.bf16.msra.mxu0 %v1268
        %1656 = vmatpush.bf16.msra.mxu0 %v1260
        %1657 = vmatpush.bf16.msra.mxu0 %v1252
        %1658 = vmatpush.bf16.msra.mxu0 %v1244
        %1659 = vmatpush.bf16.msra.mxu0 %v1236
        %1660 = vmatmul.bf16.gmra.mxu0 %v966
        %v1661 = vpop.f32.mrf.mxu0
        %v1662 = vadd.f32 0.0, %v1661
        %v1663 = vpop.f32.mrf.mxu0
        %v1664 = vadd.f32 0.0, %v1663
        %1665 = vmatmul.bf16.gmra.mxu0 %v967
        %v1666 = vpop.f32.mrf.mxu0
        %v1667 = vadd.f32 0.0, %v1666
        %v1668 = vpop.f32.mrf.mxu0
        %v1669 = vadd.f32 0.0, %v1668
        %1670 = vmatmul.bf16.gmra.mxu0 %v968
        %v1671 = vpop.f32.mrf.mxu0
        %v1672 = vadd.f32 0.0, %v1671
        %v1673 = vpop.f32.mrf.mxu0
        %v1674 = vadd.f32 0.0, %v1673
        %1675 = vmatmul.bf16.gmra.mxu0 %v969
        %v1676 = vpop.f32.mrf.mxu0
        %v1677 = vadd.f32 0.0, %v1676
        %v1678 = vpop.f32.mrf.mxu0
        %v1679 = vadd.f32 0.0, %v1678
        %1680 = vmatmul.bf16.gmra.mxu0 %v970
        %v1681 = vpop.f32.mrf.mxu0
        %v1682 = vadd.f32 0.0, %v1681
        %v1683 = vpop.f32.mrf.mxu0
        %v1684 = vadd.f32 0.0, %v1683
        %1685 = vmatmul.bf16.gmra.mxu0 %v971
        %v1686 = vpop.f32.mrf.mxu0
        %v1687 = vadd.f32 0.0, %v1686
        %v1688 = vpop.f32.mrf.mxu0
        %v1689 = vadd.f32 0.0, %v1688
        %1690 = vmatmul.bf16.gmra.mxu0 %v972
        %v1691 = vpop.f32.mrf.mxu0
        %v1692 = vadd.f32 0.0, %v1691
        %v1693 = vpop.f32.mrf.mxu0
        %v1694 = vadd.f32 0.0, %v1693
        %1695 = vmatmul.bf16.gmra.mxu0 %v973
        %v1696 = vpop.f32.mrf.mxu0
        %v1697 = vadd.f32 0.0, %v1696
        %v1698 = vpop.f32.mrf.mxu0
        %v1699 = vadd.f32 0.0, %v1698
        %1700 = vdwg.mxu0
        %1701 = vmatpush.bf16.msra.mxu0 %v1293
        %1702 = vmatpush.bf16.msra.mxu0 %v1285
        %1703 = vmatpush.bf16.msra.mxu0 %v1277
        %1704 = vmatpush.bf16.msra.mxu0 %v1269
        %1705 = vmatpush.bf16.msra.mxu0 %v1261
        %1706 = vmatpush.bf16.msra.mxu0 %v1253
        %1707 = vmatpush.bf16.msra.mxu0 %v1245
        %1708 = vmatpush.bf16.msra.mxu0 %v1237
        %1709 = vmatmul.bf16.gmra.mxu0 %v966
        %v1710 = vpop.f32.mrf.mxu0
        %v1711 = vadd.f32 0.0, %v1710
        %v1712 = vpop.f32.mrf.mxu0
        %v1713 = vadd.f32 0.0, %v1712
        %1714 = vmatmul.bf16.gmra.mxu0 %v967
        %v1715 = vpop.f32.mrf.mxu0
        %v1716 = vadd.f32 0.0, %v1715
        %v1717 = vpop.f32.mrf.mxu0
        %v1718 = vadd.f32 0.0, %v1717
        %1719 = vmatmul.bf16.gmra.mxu0 %v968
        %v1720 = vpop.f32.mrf.mxu0
        %v1721 = vadd.f32 0.0, %v1720
        %v1722 = vpop.f32.mrf.mxu0
        %v1723 = vadd.f32 0.0, %v1722
        %1724 = vmatmul.bf16.gmra.mxu0 %v969
        %v1725 = vpop.f32.mrf.mxu0
        %v1726 = vadd.f32 0.0, %v1725
        %v1727 = vpop.f32.mrf.mxu0
        %v1728 = vadd.f32 0.0, %v1727
        %1729 = vmatmul.bf16.gmra.mxu0 %v970
        %v1730 = vpop.f32.mrf.mxu0
        %v1731 = vadd.f32 0.0, %v1730
        %v1732 = vpop.f32.mrf.mxu0
        %v1733 = vadd.f32 0.0, %v1732
        %1734 = vmatmul.bf16.gmra.mxu0 %v971
        %v1735 = vpop.f32.mrf.mxu0
        %v1736 = vadd.f32 0.0, %v1735
        %v1737 = vpop.f32.mrf.mxu0
        %v1738 = vadd.f32 0.0, %v1737
        %1739 = vmatmul.bf16.gmra.mxu0 %v972
        %v1740 = vpop.f32.mrf.mxu0
        %v1741 = vadd.f32 0.0, %v1740
        %v1742 = vpop.f32.mrf.mxu0
        %v1743 = vadd.f32 0.0, %v1742
        %1744 = vmatmul.bf16.gmra.mxu0 %v973
        %v1745 = vpop.f32.mrf.mxu0
        %v1746 = vadd.f32 0.0, %v1745
        %v1747 = vpop.f32.mrf.mxu0
        %v1748 = vadd.f32 0.0, %v1747
        %1749 = vdwg.mxu0
        %s1750 = smul.u32 %s30, 3
        %s1751 = sadd.s32 %s1750, %s31
        %s1752 = sadd.s32 %s1751, 1
        %s1753 = smul.u32 %s1752, 128
        %p1754 = scmp.gt.s32.totalorder %s1753, 520
        %p1755 = scmp.le.s32.totalorder %s1753, 520
        // Predicated region
        $region65: #{tpu_custom_call.1} parent=59 // pred_check
          %p1756 = pneg %p1755
        $region66: #{tpu_custom_call.1} parent=59 // pred_check_branch
          %1758 = sbr.rel (%p1756) target = $region68
        $region67: #{tpu_custom_call.1} parent=59 // pred_region
          %v1759 = vld [vmem:[%s394] sm:$0xff]
          %v1760 = vmax.f32 %v1368, %v1370
          %v1761 = vmax.f32 %v1760, %v1373
          %v1762 = vmax.f32 %v1761, %v1375
          %v1763 = vmax.f32 %v1762, %v1378
          %v1764 = vmax.f32 %v1763, %v1380
          %v1765 = vmax.f32 %v1764, %v1383
          %v1766 = vmax.f32 %v1765, %v1385
          %v1767 = vmax.f32 %v1766, %v1388
          %v1768 = vmax.f32 %v1767, %v1390
          %v1769 = vmax.f32 %v1768, %v1393
          %v1770 = vmax.f32 %v1769, %v1395
          %v1771 = vmax.f32 %v1770, %v1398
          %v1772 = vmax.f32 %v1771, %v1400
          %v1773 = vmax.f32 %v1772, %v1403
          %v1774 = vmax.f32 %v1773, %v1405
          %v1775 = vrot.slane %v1774, 4
          %v1776 = vmax.f32 %v1774, %v1775
          %v1777 = vrot.slane %v1776, 2
          %v1778 = vmax.f32 %v1776, %v1777
          %v1779 = vrot.slane %v1778, 1
          %v1780 = vmax.f32 %v1778, %v1779
          %v1781 = vmax.f32 %v1417, %v1419
          %v1782 = vmax.f32 %v1781, %v1422
          %v1783 = vmax.f32 %v1782, %v1424
          %v1784 = vmax.f32 %v1783, %v1427
          %v1785 = vmax.f32 %v1784, %v1429
          %v1786 = vmax.f32 %v1785, %v1432
          %v1787 = vmax.f32 %v1786, %v1434
          %v1788 = vmax.f32 %v1787, %v1437
          %v1789 = vmax.f32 %v1788, %v1439
          %v1790 = vmax.f32 %v1789, %v1442
          %v1791 = vmax.f32 %v1790, %v1444
          %v1792 = vmax.f32 %v1791, %v1447
          %v1793 = vmax.f32 %v1792, %v1449
          %v1794 = vmax.f32 %v1793, %v1452
          %v1795 = vmax.f32 %v1794, %v1454
          %v1796 = vrot.slane %v1795, 4
          %v1797 = vmax.f32 %v1795, %v1796
          %v1798 = vrot.slane %v1797, 2
          %v1799 = vmax.f32 %v1797, %v1798
          %v1800 = vrot.slane %v1799, 1
          %v1801 = vmax.f32 %v1799, %v1800
          %v1802 = vmax.f32 %v1466, %v1468
          %v1803 = vmax.f32 %v1802, %v1471
          %v1804 = vmax.f32 %v1803, %v1473
          %v1805 = vmax.f32 %v1804, %v1476
          %v1806 = vmax.f32 %v1805, %v1478
          %v1807 = vmax.f32 %v1806, %v1481
          %v1808 = vmax.f32 %v1807, %v1483
          %v1809 = vmax.f32 %v1808, %v1486
          %v1810 = vmax.f32 %v1809, %v1488
          %v1811 = vmax.f32 %v1810, %v1491
          %v1812 = vmax.f32 %v1811, %v1493
          %v1813 = vmax.f32 %v1812, %v1496
          %v1814 = vmax.f32 %v1813, %v1498
          %v1815 = vmax.f32 %v1814, %v1501
          %v1816 = vmax.f32 %v1815, %v1503
          %v1817 = vrot.slane %v1816, 4
          %v1818 = vmax.f32 %v1816, %v1817
          %v1819 = vrot.slane %v1818, 2
          %v1820 = vmax.f32 %v1818, %v1819
          %v1821 = vrot.slane %v1820, 1
          %v1822 = vmax.f32 %v1820, %v1821
          %v1823 = vmax.f32 %v1515, %v1517
          %v1824 = vmax.f32 %v1823, %v1520
          %v1825 = vmax.f32 %v1824, %v1522
          %v1826 = vmax.f32 %v1825, %v1525
          %v1827 = vmax.f32 %v1826, %v1527
          %v1828 = vmax.f32 %v1827, %v1530
          %v1829 = vmax.f32 %v1828, %v1532
          %v1830 = vmax.f32 %v1829, %v1535
          %v1831 = vmax.f32 %v1830, %v1537
          %v1832 = vmax.f32 %v1831, %v1540
          %v1833 = vmax.f32 %v1832, %v1542
          %v1834 = vmax.f32 %v1833, %v1545
          %v1835 = vmax.f32 %v1834, %v1547
          %v1836 = vmax.f32 %v1835, %v1550
          %v1837 = vmax.f32 %v1836, %v1552
          %v1838 = vrot.slane %v1837, 4
          %v1839 = vmax.f32 %v1837, %v1838
          %v1840 = vrot.slane %v1839, 2
          %v1841 = vmax.f32 %v1839, %v1840
          %v1842 = vrot.slane %v1841, 1
          %v1843 = vmax.f32 %v1841, %v1842
          %v1844 = vmax.f32 %v1564, %v1566
          %v1845 = vmax.f32 %v1844, %v1569
          %v1846 = vmax.f32 %v1845, %v1571
          %v1847 = vmax.f32 %v1846, %v1574
          %v1848 = vmax.f32 %v1847, %v1576
          %v1849 = vmax.f32 %v1848, %v1579
          %v1850 = vmax.f32 %v1849, %v1581
          %v1851 = vmax.f32 %v1850, %v1584
          %v1852 = vmax.f32 %v1851, %v1586
          %v1853 = vmax.f32 %v1852, %v1589
          %v1854 = vmax.f32 %v1853, %v1591
          %v1855 = vmax.f32 %v1854, %v1594
          %v1856 = vmax.f32 %v1855, %v1596
          %v1857 = vmax.f32 %v1856, %v1599
          %v1858 = vmax.f32 %v1857, %v1601
          %v1859 = vrot.slane %v1858, 4
          %v1860 = vmax.f32 %v1858, %v1859
          %v1861 = vrot.slane %v1860, 2
          %v1862 = vmax.f32 %v1860, %v1861
          %v1863 = vrot.slane %v1862, 1
          %v1864 = vmax.f32 %v1862, %v1863
          %v1865 = vmax.f32 %v1613, %v1615
          %v1866 = vmax.f32 %v1865, %v1618
          %v1867 = vmax.f32 %v1866, %v1620
          %v1868 = vmax.f32 %v1867, %v1623
          %v1869 = vmax.f32 %v1868, %v1625
          %v1870 = vmax.f32 %v1869, %v1628
          %v1871 = vmax.f32 %v1870, %v1630
          %v1872 = vmax.f32 %v1871, %v1633
          %v1873 = vmax.f32 %v1872, %v1635
          %v1874 = vmax.f32 %v1873, %v1638
          %v1875 = vmax.f32 %v1874, %v1640
          %v1876 = vmax.f32 %v1875, %v1643
          %v1877 = vmax.f32 %v1876, %v1645
          %v1878 = vmax.f32 %v1877, %v1648
          %v1879 = vmax.f32 %v1878, %v1650
          %v1880 = vrot.slane %v1879, 4
          %v1881 = vmax.f32 %v1879, %v1880
          %v1882 = vrot.slane %v1881, 2
          %v1883 = vmax.f32 %v1881, %v1882
          %v1884 = vrot.slane %v1883, 1
          %v1885 = vmax.f32 %v1883, %v1884
          %v1886 = vmax.f32 %v1662, %v1664
          %v1887 = vmax.f32 %v1886, %v1667
          %v1888 = vmax.f32 %v1887, %v1669
          %v1889 = vmax.f32 %v1888, %v1672
          %v1890 = vmax.f32 %v1889, %v1674
          %v1891 = vmax.f32 %v1890, %v1677
          %v1892 = vmax.f32 %v1891, %v1679
          %v1893 = vmax.f32 %v1892, %v1682
          %v1894 = vmax.f32 %v1893, %v1684
          %v1895 = vmax.f32 %v1894, %v1687
          %v1896 = vmax.f32 %v1895, %v1689
          %v1897 = vmax.f32 %v1896, %v1692
          %v1898 = vmax.f32 %v1897, %v1694
          %v1899 = vmax.f32 %v1898, %v1697
          %v1900 = vmax.f32 %v1899, %v1699
          %v1901 = vrot.slane %v1900, 4
          %v1902 = vmax.f32 %v1900, %v1901
          %v1903 = vrot.slane %v1902, 2
          %v1904 = vmax.f32 %v1902, %v1903
          %v1905 = vrot.slane %v1904, 1
          %v1906 = vmax.f32 %v1904, %v1905
          %v1907 = vmax.f32 %v1711, %v1713
          %v1908 = vmax.f32 %v1907, %v1716
          %v1909 = vmax.f32 %v1908, %v1718
          %v1910 = vmax.f32 %v1909, %v1721
          %v1911 = vmax.f32 %v1910, %v1723
          %v1912 = vmax.f32 %v1911, %v1726
          %v1913 = vmax.f32 %v1912, %v1728
          %v1914 = vmax.f32 %v1913, %v1731
          %v1915 = vmax.f32 %v1914, %v1733
          %v1916 = vmax.f32 %v1915, %v1736
          %v1917 = vmax.f32 %v1916, %v1738
          %v1918 = vmax.f32 %v1917, %v1741
          %v1919 = vmax.f32 %v1918, %v1743
          %v1920 = vmax.f32 %v1919, %v1746
          %v1921 = vmax.f32 %v1920, %v1748
          %v1922 = vrot.slane %v1921, 4
          %v1923 = vmax.f32 %v1921, %v1922
          %v1924 = vrot.slane %v1923, 2
          %v1925 = vmax.f32 %v1923, %v1924
          %v1926 = vrot.slane %v1925, 1
          %v1927 = vmax.f32 %v1925, %v1926
          %v1936 = vrot.slane %v1801, 7
          %v1937 = vrot.slane %v1822, 6
          %v1938 = vrot.slane %v1843, 5
          %v1939 = vrot.slane %v1864, 4
          %v1940 = vrot.slane %v1885, 3
          %v1941 = vrot.slane %v1906, 2
          %v1942 = vrot.slane %v1927, 1
          %vm1943 = vcmask 1040384
          %v1944 = vsel %vm1943, %v1780, %v1936
          %vm1945 = vcmask 1042434
          %v1946 = vsel %vm1945, %v1937, %v1938
          %vm1947 = vcmask 1041408
          %v1948 = vsel %vm1947, %v1944, %v1946
          %vm1949 = vcmask 1044484
          %v1950 = vsel %vm1949, %v1939, %v1940
          %vm1951 = vcmask 1046534
          %v1952 = vsel %vm1951, %v1941, %v1942
          %vm1953 = vcmask 1045508
          %v1954 = vsel %vm1953, %v1950, %v1952
          %vm1955 = vcmask 1043456
          %v1956 = vsel %vm1955, %v1948, %v1954
          %v1958 = vmax.f32 %v1759, %v1956
          %1959 = vst [vmem:[%s394] sm:$0xff] %v1958
        $region68: #{tpu_custom_call.1} parent=59 // pred_fallthru
          _
        // Predicated region
        $region69: #{tpu_custom_call.1} parent=59 // pred_check
          %p1960 = pneg %p1754
        $region70: #{tpu_custom_call.1} parent=59 // pred_check_branch
          %1962 = sbr.rel (%p1960) target = $region72
        $region71: #{tpu_custom_call.1} parent=59 // pred_region
          %s1963 = smul.u32 %s1751, 128
          %v1964 = vlaneseq
          %v1965 = vshrl.u32 %v1964, 7
          %v1966 = vadd.s32 %v1965, 8
          %v1967 = vadd.s32 %v1965, 16
          %v1968 = vadd.s32 %v1965, 24
          %v1969 = vadd.s32 %v1965, 32
          %v1970 = vadd.s32 %v1965, 40
          %v1971 = vadd.s32 %v1965, 48
          %v1972 = vadd.s32 %v1965, 56
          %v1973 = vadd.s32 %v1965, 64
          %v1974 = vadd.s32 %v1965, 72
          %v1975 = vadd.s32 %v1965, 80
          %v1976 = vadd.s32 %v1965, 88
          %v1977 = vadd.s32 %v1965, 96
          %v1978 = vadd.s32 %v1965, 104
          %v1979 = vadd.s32 %v1965, 112
          %v1980 = vadd.s32 %v1965, 120
          %v1981 = vstv %s1963
          %v1982 = vadd.s32 %v1981, %v1965
          %v1983 = vadd.s32 %v1981, %v1966
          %v1984 = vadd.s32 %v1981, %v1967
          %v1985 = vadd.s32 %v1981, %v1968
          %v1986 = vadd.s32 %v1981, %v1969
          %v1987 = vadd.s32 %v1981, %v1970
          %v1988 = vadd.s32 %v1981, %v1971
          %v1989 = vadd.s32 %v1981, %v1972
          %v1990 = vadd.s32 %v1981, %v1973
          %v1991 = vadd.s32 %v1981, %v1974
          %v1992 = vadd.s32 %v1981, %v1975
          %v1993 = vadd.s32 %v1981, %v1976
          %v1994 = vadd.s32 %v1981, %v1977
          %v1995 = vadd.s32 %v1981, %v1978
          %v1996 = vadd.s32 %v1981, %v1979
          %v1997 = vadd.s32 %v1981, %v1980
          %vm1998 = vcmp.lt.s32.totalorder %v1982, 520
          %vm1999 = vcmp.lt.s32.totalorder %v1983, 520
          %vm2000 = vcmp.lt.s32.totalorder %v1984, 520
          %vm2001 = vcmp.lt.s32.totalorder %v1985, 520
          %vm2002 = vcmp.lt.s32.totalorder %v1986, 520
          %vm2003 = vcmp.lt.s32.totalorder %v1987, 520
          %vm2004 = vcmp.lt.s32.totalorder %v1988, 520
          %vm2005 = vcmp.lt.s32.totalorder %v1989, 520
          %vm2006 = vcmp.lt.s32.totalorder %v1990, 520
          %vm2007 = vcmp.lt.s32.totalorder %v1991, 520
          %vm2008 = vcmp.lt.s32.totalorder %v1992, 520
          %vm2009 = vcmp.lt.s32.totalorder %v1993, 520
          %vm2010 = vcmp.lt.s32.totalorder %v1994, 520
          %vm2011 = vcmp.lt.s32.totalorder %v1995, 520
          %vm2012 = vcmp.lt.s32.totalorder %v1996, 520
          %vm2013 = vcmp.lt.s32.totalorder %v1997, 520
          %v2014 = vsel %vm1998, 1, 0
          %v2015 = vsel %vm1999, 1, 0
          %v2016 = vsel %vm2000, 1, 0
          %v2017 = vsel %vm2001, 1, 0
          %v2018 = vsel %vm2002, 1, 0
          %v2019 = vsel %vm2003, 1, 0
          %v2020 = vsel %vm2004, 1, 0
          %v2021 = vsel %vm2005, 1, 0
          %v2022 = vsel %vm2006, 1, 0
          %v2023 = vsel %vm2007, 1, 0
          %v2024 = vsel %vm2008, 1, 0
          %v2025 = vsel %vm2009, 1, 0
          %v2026 = vsel %vm2010, 1, 0
          %v2027 = vsel %vm2011, 1, 0
          %v2028 = vsel %vm2012, 1, 0
          %v2029 = vsel %vm2013, 1, 0
          %vm2030 = vcmp.eq.s32.totalorder %v2014, 1
          %vm2031 = vcmp.eq.s32.totalorder %v2015, 1
          %vm2032 = vcmp.eq.s32.totalorder %v2016, 1
          %vm2033 = vcmp.eq.s32.totalorder %v2017, 1
          %vm2034 = vcmp.eq.s32.totalorder %v2018, 1
          %vm2035 = vcmp.eq.s32.totalorder %v2019, 1
          %vm2036 = vcmp.eq.s32.totalorder %v2020, 1
          %vm2037 = vcmp.eq.s32.totalorder %v2021, 1
          %vm2038 = vcmp.eq.s32.totalorder %v2022, 1
          %vm2039 = vcmp.eq.s32.totalorder %v2023, 1
          %vm2040 = vcmp.eq.s32.totalorder %v2024, 1
          %vm2041 = vcmp.eq.s32.totalorder %v2025, 1
          %vm2042 = vcmp.eq.s32.totalorder %v2026, 1
          %vm2043 = vcmp.eq.s32.totalorder %v2027, 1
          %vm2044 = vcmp.eq.s32.totalorder %v2028, 1
          %vm2045 = vcmp.eq.s32.totalorder %v2029, 1
          %v2046 = vsel %vm2030, %v1368, -inf
          %v2047 = vsel %vm2030, %v1417, -inf
          %v2048 = vsel %vm2030, %v1466, -inf
          %v2049 = vsel %vm2030, %v1515, -inf
          %v2050 = vsel %vm2030, %v1564, -inf
          %v2051 = vsel %vm2030, %v1613, -inf
          %v2052 = vsel %vm2030, %v1662, -inf
          %v2053 = vsel %vm2030, %v1711, -inf
          %v2054 = vsel %vm2031, %v1370, -inf
          %v2055 = vsel %vm2031, %v1419, -inf
          %v2056 = vsel %vm2031, %v1468, -inf
          %v2057 = vsel %vm2031, %v1517, -inf
          %v2058 = vsel %vm2031, %v1566, -inf
          %v2059 = vsel %vm2031, %v1615, -inf
          %v2060 = vsel %vm2031, %v1664, -inf
          %v2061 = vsel %vm2031, %v1713, -inf
          %v2062 = vsel %vm2032, %v1373, -inf
          %v2063 = vsel %vm2032, %v1422, -inf
          %v2064 = vsel %vm2032, %v1471, -inf
          %v2065 = vsel %vm2032, %v1520, -inf
          %v2066 = vsel %vm2032, %v1569, -inf
          %v2067 = vsel %vm2032, %v1618, -inf
          %v2068 = vsel %vm2032, %v1667, -inf
          %v2069 = vsel %vm2032, %v1716, -inf
          %v2070 = vsel %vm2033, %v1375, -inf
          %v2071 = vsel %vm2033, %v1424, -inf
          %v2072 = vsel %vm2033, %v1473, -inf
          %v2073 = vsel %vm2033, %v1522, -inf
          %v2074 = vsel %vm2033, %v1571, -inf
          %v2075 = vsel %vm2033, %v1620, -inf
          %v2076 = vsel %vm2033, %v1669, -inf
          %v2077 = vsel %vm2033, %v1718, -inf
          %v2078 = vsel %vm2034, %v1378, -inf
          %v2079 = vsel %vm2034, %v1427, -inf
          %v2080 = vsel %vm2034, %v1476, -inf
          %v2081 = vsel %vm2034, %v1525, -inf
          %v2082 = vsel %vm2034, %v1574, -inf
          %v2083 = vsel %vm2034, %v1623, -inf
          %v2084 = vsel %vm2034, %v1672, -inf
          %v2085 = vsel %vm2034, %v1721, -inf
          %v2086 = vsel %vm2035, %v1380, -inf
          %v2087 = vsel %vm2035, %v1429, -inf
          %v2088 = vsel %vm2035, %v1478, -inf
          %v2089 = vsel %vm2035, %v1527, -inf
          %v2090 = vsel %vm2035, %v1576, -inf
          %v2091 = vsel %vm2035, %v1625, -inf
          %v2092 = vsel %vm2035, %v1674, -inf
          %v2093 = vsel %vm2035, %v1723, -inf
          %v2094 = vsel %vm2036, %v1383, -inf
          %v2095 = vsel %vm2036, %v1432, -inf
          %v2096 = vsel %vm2036, %v1481, -inf
          %v2097 = vsel %vm2036, %v1530, -inf
          %v2098 = vsel %vm2036, %v1579, -inf
          %v2099 = vsel %vm2036, %v1628, -inf
          %v2100 = vsel %vm2036, %v1677, -inf
          %v2101 = vsel %vm2036, %v1726, -inf
          %v2102 = vsel %vm2037, %v1385, -inf
          %v2103 = vsel %vm2037, %v1434, -inf
          %v2104 = vsel %vm2037, %v1483, -inf
          %v2105 = vsel %vm2037, %v1532, -inf
          %v2106 = vsel %vm2037, %v1581, -inf
          %v2107 = vsel %vm2037, %v1630, -inf
          %v2108 = vsel %vm2037, %v1679, -inf
          %v2109 = vsel %vm2037, %v1728, -inf
          %v2110 = vsel %vm2038, %v1388, -inf
          %v2111 = vsel %vm2038, %v1437, -inf
          %v2112 = vsel %vm2038, %v1486, -inf
          %v2113 = vsel %vm2038, %v1535, -inf
          %v2114 = vsel %vm2038, %v1584, -inf
          %v2115 = vsel %vm2038, %v1633, -inf
          %v2116 = vsel %vm2038, %v1682, -inf
          %v2117 = vsel %vm2038, %v1731, -inf
          %v2118 = vsel %vm2039, %v1390, -inf
          %v2119 = vsel %vm2039, %v1439, -inf
          %v2120 = vsel %vm2039, %v1488, -inf
          %v2121 = vsel %vm2039, %v1537, -inf
          %v2122 = vsel %vm2039, %v1586, -inf
          %v2123 = vsel %vm2039, %v1635, -inf
          %v2124 = vsel %vm2039, %v1684, -inf
          %v2125 = vsel %vm2039, %v1733, -inf
          %v2126 = vsel %vm2040, %v1393, -inf
          %v2127 = vsel %vm2040, %v1442, -inf
          %v2128 = vsel %vm2040, %v1491, -inf
          %v2129 = vsel %vm2040, %v1540, -inf
          %v2130 = vsel %vm2040, %v1589, -inf
          %v2131 = vsel %vm2040, %v1638, -inf
          %v2132 = vsel %vm2040, %v1687, -inf
          %v2133 = vsel %vm2040, %v1736, -inf
          %v2134 = vsel %vm2041, %v1395, -inf
          %v2135 = vsel %vm2041, %v1444, -inf
          %v2136 = vsel %vm2041, %v1493, -inf
          %v2137 = vsel %vm2041, %v1542, -inf
          %v2138 = vsel %vm2041, %v1591, -inf
          %v2139 = vsel %vm2041, %v1640, -inf
          %v2140 = vsel %vm2041, %v1689, -inf
          %v2141 = vsel %vm2041, %v1738, -inf
          %v2142 = vsel %vm2042, %v1398, -inf
          %v2143 = vsel %vm2042, %v1447, -inf
          %v2144 = vsel %vm2042, %v1496, -inf
          %v2145 = vsel %vm2042, %v1545, -inf
          %v2146 = vsel %vm2042, %v1594, -inf
          %v2147 = vsel %vm2042, %v1643, -inf
          %v2148 = vsel %vm2042, %v1692, -inf
          %v2149 = vsel %vm2042, %v1741, -inf
          %v2150 = vsel %vm2043, %v1400, -inf
          %v2151 = vsel %vm2043, %v1449, -inf
          %v2152 = vsel %vm2043, %v1498, -inf
          %v2153 = vsel %vm2043, %v1547, -inf
          %v2154 = vsel %vm2043, %v1596, -inf
          %v2155 = vsel %vm2043, %v1645, -inf
          %v2156 = vsel %vm2043, %v1694, -inf
          %v2157 = vsel %vm2043, %v1743, -inf
          %v2158 = vsel %vm2044, %v1403, -inf
          %v2159 = vsel %vm2044, %v1452, -inf
          %v2160 = vsel %vm2044, %v1501, -inf
          %v2161 = vsel %vm2044, %v1550, -inf
          %v2162 = vsel %vm2044, %v1599, -inf
          %v2163 = vsel %vm2044, %v1648, -inf
          %v2164 = vsel %vm2044, %v1697, -inf
          %v2165 = vsel %vm2044, %v1746, -inf
          %v2166 = vsel %vm2045, %v1405, -inf
          %v2167 = vsel %vm2045, %v1454, -inf
          %v2168 = vsel %vm2045, %v1503, -inf
          %v2169 = vsel %vm2045, %v1552, -inf
          %v2170 = vsel %vm2045, %v1601, -inf
          %v2171 = vsel %vm2045, %v1650, -inf
          %v2172 = vsel %vm2045, %v1699, -inf
          %v2173 = vsel %vm2045, %v1748, -inf
          %v2174 = vld [vmem:[%s394] sm:$0xff]
          %v2175 = vmax.f32 %v2046, %v2054
          %v2176 = vmax.f32 %v2175, %v2062
          %v2177 = vmax.f32 %v2176, %v2070
          %v2178 = vmax.f32 %v2177, %v2078
          %v2179 = vmax.f32 %v2178, %v2086
          %v2180 = vmax.f32 %v2179, %v2094
          %v2181 = vmax.f32 %v2180, %v2102
          %v2182 = vmax.f32 %v2181, %v2110
          %v2183 = vmax.f32 %v2182, %v2118
          %v2184 = vmax.f32 %v2183, %v2126
          %v2185 = vmax.f32 %v2184, %v2134
          %v2186 = vmax.f32 %v2185, %v2142
          %v2187 = vmax.f32 %v2186, %v2150
          %v2188 = vmax.f32 %v2187, %v2158
          %v2189 = vmax.f32 %v2188, %v2166
          %v2190 = vrot.slane %v2189, 4
          %v2191 = vmax.f32 %v2189, %v2190
          %v2192 = vrot.slane %v2191, 2
          %v2193 = vmax.f32 %v2191, %v2192
          %v2194 = vrot.slane %v2193, 1
          %v2195 = vmax.f32 %v2193, %v2194
          %v2196 = vmax.f32 %v2047, %v2055
          %v2197 = vmax.f32 %v2196, %v2063
          %v2198 = vmax.f32 %v2197, %v2071
          %v2199 = vmax.f32 %v2198, %v2079
          %v2200 = vmax.f32 %v2199, %v2087
          %v2201 = vmax.f32 %v2200, %v2095
          %v2202 = vmax.f32 %v2201, %v2103
          %v2203 = vmax.f32 %v2202, %v2111
          %v2204 = vmax.f32 %v2203, %v2119
          %v2205 = vmax.f32 %v2204, %v2127
          %v2206 = vmax.f32 %v2205, %v2135
          %v2207 = vmax.f32 %v2206, %v2143
          %v2208 = vmax.f32 %v2207, %v2151
          %v2209 = vmax.f32 %v2208, %v2159
          %v2210 = vmax.f32 %v2209, %v2167
          %v2211 = vrot.slane %v2210, 4
          %v2212 = vmax.f32 %v2210, %v2211
          %v2213 = vrot.slane %v2212, 2
          %v2214 = vmax.f32 %v2212, %v2213
          %v2215 = vrot.slane %v2214, 1
          %v2216 = vmax.f32 %v2214, %v2215
          %v2217 = vmax.f32 %v2048, %v2056
          %v2218 = vmax.f32 %v2217, %v2064
          %v2219 = vmax.f32 %v2218, %v2072
          %v2220 = vmax.f32 %v2219, %v2080
          %v2221 = vmax.f32 %v2220, %v2088
          %v2222 = vmax.f32 %v2221, %v2096
          %v2223 = vmax.f32 %v2222, %v2104
          %v2224 = vmax.f32 %v2223, %v2112
          %v2225 = vmax.f32 %v2224, %v2120
          %v2226 = vmax.f32 %v2225, %v2128
          %v2227 = vmax.f32 %v2226, %v2136
          %v2228 = vmax.f32 %v2227, %v2144
          %v2229 = vmax.f32 %v2228, %v2152
          %v2230 = vmax.f32 %v2229, %v2160
          %v2231 = vmax.f32 %v2230, %v2168
          %v2232 = vrot.slane %v2231, 4
          %v2233 = vmax.f32 %v2231, %v2232
          %v2234 = vrot.slane %v2233, 2
          %v2235 = vmax.f32 %v2233, %v2234
          %v2236 = vrot.slane %v2235, 1
          %v2237 = vmax.f32 %v2235, %v2236
          %v2238 = vmax.f32 %v2049, %v2057
          %v2239 = vmax.f32 %v2238, %v2065
          %v2240 = vmax.f32 %v2239, %v2073
          %v2241 = vmax.f32 %v2240, %v2081
          %v2242 = vmax.f32 %v2241, %v2089
          %v2243 = vmax.f32 %v2242, %v2097
          %v2244 = vmax.f32 %v2243, %v2105
          %v2245 = vmax.f32 %v2244, %v2113
          %v2246 = vmax.f32 %v2245, %v2121
          %v2247 = vmax.f32 %v2246, %v2129
          %v2248 = vmax.f32 %v2247, %v2137
          %v2249 = vmax.f32 %v2248, %v2145
          %v2250 = vmax.f32 %v2249, %v2153
          %v2251 = vmax.f32 %v2250, %v2161
          %v2252 = vmax.f32 %v2251, %v2169
          %v2253 = vrot.slane %v2252, 4
          %v2254 = vmax.f32 %v2252, %v2253
          %v2255 = vrot.slane %v2254, 2
          %v2256 = vmax.f32 %v2254, %v2255
          %v2257 = vrot.slane %v2256, 1
          %v2258 = vmax.f32 %v2256, %v2257
          %v2259 = vmax.f32 %v2050, %v2058
          %v2260 = vmax.f32 %v2259, %v2066
          %v2261 = vmax.f32 %v2260, %v2074
          %v2262 = vmax.f32 %v2261, %v2082
          %v2263 = vmax.f32 %v2262, %v2090
          %v2264 = vmax.f32 %v2263, %v2098
          %v2265 = vmax.f32 %v2264, %v2106
          %v2266 = vmax.f32 %v2265, %v2114
          %v2267 = vmax.f32 %v2266, %v2122
          %v2268 = vmax.f32 %v2267, %v2130
          %v2269 = vmax.f32 %v2268, %v2138
          %v2270 = vmax.f32 %v2269, %v2146
          %v2271 = vmax.f32 %v2270, %v2154
          %v2272 = vmax.f32 %v2271, %v2162
          %v2273 = vmax.f32 %v2272, %v2170
          %v2274 = vrot.slane %v2273, 4
          %v2275 = vmax.f32 %v2273, %v2274
          %v2276 = vrot.slane %v2275, 2
          %v2277 = vmax.f32 %v2275, %v2276
          %v2278 = vrot.slane %v2277, 1
          %v2279 = vmax.f32 %v2277, %v2278
          %v2280 = vmax.f32 %v2051, %v2059
          %v2281 = vmax.f32 %v2280, %v2067
          %v2282 = vmax.f32 %v2281, %v2075
          %v2283 = vmax.f32 %v2282, %v2083
          %v2284 = vmax.f32 %v2283, %v2091
          %v2285 = vmax.f32 %v2284, %v2099
          %v2286 = vmax.f32 %v2285, %v2107
          %v2287 = vmax.f32 %v2286, %v2115
          %v2288 = vmax.f32 %v2287, %v2123
          %v2289 = vmax.f32 %v2288, %v2131
          %v2290 = vmax.f32 %v2289, %v2139
          %v2291 = vmax.f32 %v2290, %v2147
          %v2292 = vmax.f32 %v2291, %v2155
          %v2293 = vmax.f32 %v2292, %v2163
          %v2294 = vmax.f32 %v2293, %v2171
          %v2295 = vrot.slane %v2294, 4
          %v2296 = vmax.f32 %v2294, %v2295
          %v2297 = vrot.slane %v2296, 2
          %v2298 = vmax.f32 %v2296, %v2297
          %v2299 = vrot.slane %v2298, 1
          %v2300 = vmax.f32 %v2298, %v2299
          %v2301 = vmax.f32 %v2052, %v2060
          %v2302 = vmax.f32 %v2301, %v2068
          %v2303 = vmax.f32 %v2302, %v2076
          %v2304 = vmax.f32 %v2303, %v2084
          %v2305 = vmax.f32 %v2304, %v2092
          %v2306 = vmax.f32 %v2305, %v2100
          %v2307 = vmax.f32 %v2306, %v2108
          %v2308 = vmax.f32 %v2307, %v2116
          %v2309 = vmax.f32 %v2308, %v2124
          %v2310 = vmax.f32 %v2309, %v2132
          %v2311 = vmax.f32 %v2310, %v2140
          %v2312 = vmax.f32 %v2311, %v2148
          %v2313 = vmax.f32 %v2312, %v2156
          %v2314 = vmax.f32 %v2313, %v2164
          %v2315 = vmax.f32 %v2314, %v2172
          %v2316 = vrot.slane %v2315, 4
          %v2317 = vmax.f32 %v2315, %v2316
          %v2318 = vrot.slane %v2317, 2
          %v2319 = vmax.f32 %v2317, %v2318
          %v2320 = vrot.slane %v2319, 1
          %v2321 = vmax.f32 %v2319, %v2320
          %v2322 = vmax.f32 %v2053, %v2061
          %v2323 = vmax.f32 %v2322, %v2069
          %v2324 = vmax.f32 %v2323, %v2077
          %v2325 = vmax.f32 %v2324, %v2085
          %v2326 = vmax.f32 %v2325, %v2093
          %v2327 = vmax.f32 %v2326, %v2101
          %v2328 = vmax.f32 %v2327, %v2109
          %v2329 = vmax.f32 %v2328, %v2117
          %v2330 = vmax.f32 %v2329, %v2125
          %v2331 = vmax.f32 %v2330, %v2133
          %v2332 = vmax.f32 %v2331, %v2141
          %v2333 = vmax.f32 %v2332, %v2149
          %v2334 = vmax.f32 %v2333, %v2157
          %v2335 = vmax.f32 %v2334, %v2165
          %v2336 = vmax.f32 %v2335, %v2173
          %v2337 = vrot.slane %v2336, 4
          %v2338 = vmax.f32 %v2336, %v2337
          %v2339 = vrot.slane %v2338, 2
          %v2340 = vmax.f32 %v2338, %v2339
          %v2341 = vrot.slane %v2340, 1
          %v2342 = vmax.f32 %v2340, %v2341
          %v2351 = vrot.slane %v2216, 7
          %v2352 = vrot.slane %v2237, 6
          %v2353 = vrot.slane %v2258, 5
          %v2354 = vrot.slane %v2279, 4
          %v2355 = vrot.slane %v2300, 3
          %v2356 = vrot.slane %v2321, 2
          %v2357 = vrot.slane %v2342, 1
          %vm2358 = vcmask 1040384
          %v2359 = vsel %vm2358, %v2195, %v2351
          %vm2360 = vcmask 1042434
          %v2361 = vsel %vm2360, %v2352, %v2353
          %vm2362 = vcmask 1041408
          %v2363 = vsel %vm2362, %v2359, %v2361
          %vm2364 = vcmask 1044484
          %v2365 = vsel %vm2364, %v2354, %v2355
          %vm2366 = vcmask 1046534
          %v2367 = vsel %vm2366, %v2356, %v2357
          %vm2368 = vcmask 1045508
          %v2369 = vsel %vm2368, %v2365, %v2367
          %vm2370 = vcmask 1043456
          %v2371 = vsel %vm2370, %v2363, %v2369
          %v2373 = vmax.f32 %v2174, %v2371
          %2374 = vst [vmem:[%s394] sm:$0xff] %v2373
        $region72: #{tpu_custom_call.1} parent=59 // pred_fallthru
          _
        %s2375 = sand.u32 %s274, 1
        %s2376 = scalar_lea.sflag [#allocation3], %s2375
        %s2377 = sand.u32 %s274, 1
        %s2378 = smul.addr %s2377, 8
        %s2379 = scalar_lea.vmem [#allocation2], %s2378
        // Predicated region
        $region73: #{tpu_custom_call.1} parent=59 // pred_check
          %p2380 = pneg %p284
        $region74: #{tpu_custom_call.1} parent=59 // pred_check_branch
          %2382 = sbr.rel (%p2380) target = $region76
        $region75: #{tpu_custom_call.1} parent=59 // pred_region
          %2384 = vsyncadd %s2376, 0
          %s2385 = smul.addr %s30, 8
          %s2386 = smul.addr %s29, 16
          %s2387 = sadd.s32 %s2385, %s2386
          %s2388 = scalar_lea.hbm %s10, %s2387
          %s2390 = sshll.u32 %s2379, 4
          %s2391 = int_to_ptr.vmem [resolvable:$true] %s2390
          %s2392 = sshll.u32 %s2388, 4
          %s2393 = int_to_ptr.hbm [resolvable:$true] %s2392
          %2395 = dma.vmem_to_hbm [thread:$0]  %s2391, 128, %s2393, %s2376
        $region76: #{tpu_custom_call.1} parent=59 // pred_fallthru
          _
      $region60: #{tpu_custom_call.1} parent=5 // pred_fallthru
        _
      %p2396 = scmp.le.s32.totalorder 2, %s19
      // Predicated region
      $region77: #{tpu_custom_call.1} parent=5 // pred_check
        %p2397 = pneg %p2396
      $region78: #{tpu_custom_call.1} parent=5 // pred_check_branch
        %2399 = sbr.rel (%p2397) target = $region80
      $region79: #{tpu_custom_call.1} parent=5 // pred_region
        %s2400 = ssub.s32 %s19, 2
        // Predicated region
        $region81: #{tpu_custom_call.1} parent=79 // pred_check
          %p2401 = pneg %p290
        $region82: #{tpu_custom_call.1} parent=79 // pred_check_branch
          %2403 = sbr.rel (%p2401) target = $region84
        $region83: #{tpu_custom_call.1} parent=79 // pred_region
          %s2404 = sand.u32 %s275, 1
          %s2405 = scalar_lea.sflag [#allocation3], %s2404
          %s2406 = sand.u32 %s275, 1
          %s2407 = smul.addr %s2406, 8
          %s2408 = scalar_lea.vmem [#allocation2], %s2407
          %2410 = dma.done %s2405, 128
        $region84: #{tpu_custom_call.1} parent=79 // pred_fallthru
          _
      $region80: #{tpu_custom_call.1} parent=5 // pred_fallthru
        _
    $region6: #{tpu_custom_call.1} parent=1 // loop_footer
      %s23 = sadd.s32 1, %s19
    $region7: #{tpu_custom_call.1} parent=1 // loop_footer_branch
      %18 = sbr.rel target = $region3
    $region8: #{tpu_custom_call.1} parent=1 // loop_exit
      _
    %2411 = vsyncpa [#allocation3], 1
    %s2412 = scalar_lea.sflag [#allocation3], 1
    %2413 = vsyncpa %s2412, 1

</llo_original>
